<compile_context>
chip_gen: v6e
topology: v6e:2x2x1
jax: 0.10.0
libtpu: 0.0.40
codegen_flags: <defaults>
</compile_context>

<pallas_src>
import numpy as np

import jax
import jax.numpy as jnp
from jax.experimental import pallas as pl
from jax.experimental.pallas import tpu as pltpu

Z_DIM = 2
N_HIDDEN = 1000           # logical hidden width (PyTorch N)
N_PAD = 1024              # padded hidden width (multiple of 128 lanes)


def _dnet_gauss_kernel(x_ref, w1_ref, b1_ref, w2_ref, w2s_ref, b2_ref, w3_ref, b3_ref,
                       o_ref):
    # ---- lin1 (K=2) on the VPU: two broadcast FMAs --------------------------------
    x = x_ref[...]                                     # (B, 2) f32
    w1 = w1_ref[...].astype(jnp.float32)               # (2, N_PAD)
    h1 = x[:, 0:1] * w1[0:1, :] + x[:, 1:2] * w1[1:2, :] + b1_ref[...]
    # eval-mode dropout == identity
    h1 = jnp.maximum(h1, 0.0)                          # (B, N_PAD) f32

    # ---- lin2 on the MXU: int8 weights -> lossless bf16 cast, f32 accumulation ----
    w2 = w2_ref[...].astype(jnp.bfloat16)              # (N_PAD, N_PAD), exact ints
    acc = jnp.dot(h1.astype(jnp.bfloat16), w2,
                  preferred_element_type=jnp.float32)  # (B, N_PAD) f32
    # per-output-column dequant scale, then bias + relu (eval-mode dropout == identity)
    h2 = jnp.maximum(acc * w2s_ref[...] + b2_ref[...], 0.0)

    # ---- lin3 (N=1) as VPU multiply + lane reduction, then sigmoid ----------------
    w3 = w3_ref[...].astype(jnp.float32)               # (1, N_PAD)
    logit = jnp.sum(h2 * w3, axis=-1, keepdims=True) + b3_ref[...]
    o_ref[...] = jax.nn.sigmoid(logit).astype(o_ref.dtype)


def d_net_gauss_forward(x, params):
    """x: (B, z_dim) float32. params: padded parameter dict (W2 int8 + per-col scales)."""
    w1, b1 = params["w1"], params["b1"]
    w2, w2s, b2 = params["w2"], params["w2_scale"], params["b2"]
    w3, b3 = params["w3"], params["b3"]

    B = x.shape[0]
    B_pad = max(8, ((B + 7) // 8) * 8)
    if B_pad != B:
        x = jnp.pad(x, ((0, B_pad - B), (0, 0)))

    weight_bytes = w2.size * 1 + (w1.size + w3.size) * 2 + w2s.size * 4
    bias_bytes = (b1.size + b2.size + b3.size) * 4
    io_bytes = (x.size + B_pad) * 4
    cost = pl.CostEstimate(
        flops=2 * B_pad * (Z_DIM * N_PAD + N_PAD * N_PAD + N_PAD),
        transcendentals=B_pad,
        bytes_accessed=weight_bytes + bias_bytes + io_bytes,
    )

    out = pl.pallas_call(
        _dnet_gauss_kernel,
        out_shape=jax.ShapeDtypeStruct((B_pad, 1), jnp.float32),
        grid_spec=pltpu.PrefetchScalarGridSpec(
            num_scalar_prefetch=0,
            grid=(1,),                                          # single fused pass
            in_specs=[
                pl.BlockSpec((B_pad, Z_DIM), lambda i: (0, 0)),   # x
                pl.BlockSpec((Z_DIM, N_PAD), lambda i: (0, 0)),   # W1 (bf16)
                pl.BlockSpec((1, N_PAD), lambda i: (0, 0)),       # b1 (f32)
                pl.BlockSpec((N_PAD, N_PAD), lambda i: (0, 0)),   # W2 (int8) - dominant DMA
                pl.BlockSpec((1, N_PAD), lambda i: (0, 0)),       # W2 per-column scale (f32)
                pl.BlockSpec((1, N_PAD), lambda i: (0, 0)),       # b2 (f32)
                pl.BlockSpec((1, N_PAD), lambda i: (0, 0)),       # W3 row (bf16)
                pl.BlockSpec((1, 1), lambda i: (0, 0)),           # b3
            ],
            out_specs=pl.BlockSpec((B_pad, 1), lambda i: (0, 0)),
        ),
        compiler_params=pltpu.CompilerParams(
            dimension_semantics=("arbitrary",),
            vmem_limit_bytes=16 << 20,
        ),
        cost_estimate=cost,
    )(x, w1, b1, w2, w2s, b2, w3, b3)

    return out[:B]


def init_params(key):
    """PyTorch-Linear-like U(-1/sqrt(fan_in), 1/sqrt(fan_in)) init, zero-padded to N_PAD.

    W1/W3 stored bf16, biases f32, W2 quantized to int8 with per-output-column f32 scales.
    Weights stored (in_features, out_features); W3 stored as a (1, N_PAD) row."""
    ks = jax.random.split(key, 6)

    def lin(kw, kb, fan_in, fan_out, pad_in, pad_out):
        bound = 1.0 / float(np.sqrt(fan_in))
        w = jax.random.uniform(kw, (fan_in, fan_out), jnp.float32, -bound, bound)
        b = jax.random.uniform(kb, (1, fan_out), jnp.float32, -bound, bound)
        w = jnp.pad(w, ((0, pad_in - fan_in), (0, pad_out - fan_out)))
        b = jnp.pad(b, ((0, 0), (0, pad_out - fan_out)))
        return w, b

    w1, b1 = lin(ks[0], ks[1], Z_DIM, N_HIDDEN, Z_DIM, N_PAD)
    w2, b2 = lin(ks[2], ks[3], N_HIDDEN, N_HIDDEN, N_PAD, N_PAD)
    w3, b3 = lin(ks[4], ks[5], N_HIDDEN, 1, N_PAD, 1)

    # symmetric per-output-column int8 quantization of W2 (padded columns -> scale 1, q 0)
    max_abs = jnp.max(jnp.abs(w2), axis=0)                       # (N_PAD,)
    w2_scale = jnp.where(max_abs > 0, max_abs / 127.0, 1.0)      # (N_PAD,)
    w2_q = jnp.clip(jnp.round(w2 / w2_scale[None, :]), -127, 127).astype(jnp.int8)

    return {
        "w1": w1.astype(jnp.bfloat16), "b1": b1,
        "w2": w2_q, "w2_scale": w2_scale.reshape(1, N_PAD).astype(jnp.float32), "b2": b2,
        "w3": w3.T.astype(jnp.bfloat16), "b3": b3,   # w3 as (1, N_PAD) row
    }


if __name__ == "__main__":
    key = jax.random.PRNGKey(0)
    k_params, k_x = jax.random.split(key)

    params = init_params(k_params)

    B = 8  # small batch
    x = jax.random.normal(k_x, (B, Z_DIM), dtype=jnp.float32)

    out = d_net_gauss_forward(x, params)
    out = jax.block_until_ready(out)
    assert out.shape == (B, 1), out.shape

    # ---- float64 numpy reference using the same stored (bf16 / int8+scale) weights ----
    xw = np.asarray(x, dtype=np.float64)
    w1f = np.asarray(params["w1"].astype(jnp.float32), dtype=np.float64)
    b1f = np.asarray(params["b1"], dtype=np.float64)
    w2q = np.asarray(params["w2"], dtype=np.float64)             # int8 values
    w2s = np.asarray(params["w2_scale"], dtype=np.float64)       # (1, N_PAD)
    w2f = w2q * w2s                                              # dequantized W2
    b2f = np.asarray(params["b2"], dtype=np.float64)
    w3f = np.asarray(params["w3"].astype(jnp.float32), dtype=np.float64)
    b3f = np.asarray(params["b3"], dtype=np.float64)

    h1 = np.maximum(xw @ w1f + b1f, 0.0)
    # mimic the kernel's h1 -> bf16 cast before the lin2 matmul
    h1 = np.asarray(jnp.asarray(h1, dtype=jnp.bfloat16).astype(jnp.float32),
                    dtype=np.float64)
    h2 = np.maximum(h1 @ w2f + b2f, 0.0)
    logit = (h2 * w3f).sum(axis=-1, keepdims=True) + b3f
    ref = 1.0 / (1.0 + np.exp(-logit))

    assert np.allclose(np.asarray(out, dtype=np.float64), ref,
                       atol=5e-3, rtol=5e-3), "mismatch vs reference"

    print("KERNEL_OK")
</pallas_src>

<mosaic_0001>
module attributes {stable_mosaic.version = 11 : i64} {
  func.func @_dnet_gauss_kernel(%arg0: i32, %arg1: memref<8x2xf32, #tpu.memory_space<vmem>>, %arg2: memref<2x1024xbf16, #tpu.memory_space<vmem>>, %arg3: memref<1x1024xf32, #tpu.memory_space<vmem>>, %arg4: memref<1024x1024xi8, #tpu.memory_space<vmem>>, %arg5: memref<1x1024xf32, #tpu.memory_space<vmem>>, %arg6: memref<1x1024xf32, #tpu.memory_space<vmem>>, %arg7: memref<1x1024xbf16, #tpu.memory_space<vmem>>, %arg8: memref<1x1xf32, #tpu.memory_space<vmem>>, %arg9: memref<8x1xf32, #tpu.memory_space<vmem>>) attributes {dimension_semantics = [#tpu.dimension_semantics<arbitrary>], iteration_bounds = array<i64: 1>, scalar_prefetch = 0 : i64, scratch_operands = 0 : i64, tpu.core_type = #tpu.core_type<tc>, window_params = [{pipeline_mode = #tpu.pipeline_mode<synchronous>, transform_indices = @transform_0, window_bounds = array<i64: 8, 2>}, {pipeline_mode = #tpu.pipeline_mode<synchronous>, transform_indices = @transform_1, window_bounds = array<i64: 2, 1024>}, {pipeline_mode = #tpu.pipeline_mode<synchronous>, transform_indices = @transform_2, window_bounds = array<i64: 1, 1024>}, {pipeline_mode = #tpu.pipeline_mode<synchronous>, transform_indices = @transform_3, window_bounds = array<i64: 1024, 1024>}, {pipeline_mode = #tpu.pipeline_mode<synchronous>, transform_indices = @transform_4, window_bounds = array<i64: 1, 1024>}, {pipeline_mode = #tpu.pipeline_mode<synchronous>, transform_indices = @transform_5, window_bounds = array<i64: 1, 1024>}, {pipeline_mode = #tpu.pipeline_mode<synchronous>, transform_indices = @transform_6, window_bounds = array<i64: 1, 1024>}, {pipeline_mode = #tpu.pipeline_mode<synchronous>, transform_indices = @transform_7, window_bounds = array<i64: 1, 1>}, {pipeline_mode = #tpu.pipeline_mode<synchronous>, transform_indices = @transform_8, window_bounds = array<i64: 8, 1>}]} {
    %c0 = arith.constant 0 : index
    %c0_0 = arith.constant 0 : index
    %0 = vector.load %arg1[%c0, %c0_0] : memref<8x2xf32, #tpu.memory_space<vmem>>, vector<8x2xf32>
    %c0_1 = arith.constant 0 : index
    %c0_2 = arith.constant 0 : index
    %1 = vector.load %arg2[%c0_1, %c0_2] : memref<2x1024xbf16, #tpu.memory_space<vmem>>, vector<2x1024xbf16>
    %2 = arith.extf %1 : vector<2x1024xbf16> to vector<2x1024xf32>
    %3 = vector.extract_strided_slice %0 {offsets = [0, 0], sizes = [8, 1], strides = [1, 1]} : vector<8x2xf32> to vector<8x1xf32>
    %4 = vector.extract_strided_slice %2 {offsets = [0, 0], sizes = [1, 1024], strides = [1, 1]} : vector<2x1024xf32> to vector<1x1024xf32>
    %5 = vector.broadcast %3 : vector<8x1xf32> to vector<8x1024xf32>
    %6 = vector.broadcast %4 : vector<1x1024xf32> to vector<8x1024xf32>
    %7 = arith.mulf %5, %6 : vector<8x1024xf32>
    %8 = vector.extract_strided_slice %0 {offsets = [0, 1], sizes = [8, 1], strides = [1, 1]} : vector<8x2xf32> to vector<8x1xf32>
    %9 = vector.extract_strided_slice %2 {offsets = [1, 0], sizes = [1, 1024], strides = [1, 1]} : vector<2x1024xf32> to vector<1x1024xf32>
    %10 = vector.broadcast %8 : vector<8x1xf32> to vector<8x1024xf32>
    %11 = vector.broadcast %9 : vector<1x1024xf32> to vector<8x1024xf32>
    %12 = arith.mulf %10, %11 : vector<8x1024xf32>
    %13 = arith.addf %7, %12 : vector<8x1024xf32>
    %c0_3 = arith.constant 0 : index
    %c0_4 = arith.constant 0 : index
    %14 = vector.load %arg3[%c0_3, %c0_4] : memref<1x1024xf32, #tpu.memory_space<vmem>>, vector<1x1024xf32>
    %15 = vector.broadcast %14 : vector<1x1024xf32> to vector<8x1024xf32>
    %16 = arith.addf %13, %15 : vector<8x1024xf32>
    %cst = arith.constant 0.000000e+00 : f32
    %17 = vector.broadcast %cst : f32 to vector<8x1024xf32>
    %18 = arith.maximumf %16, %17 : vector<8x1024xf32>
    %c0_5 = arith.constant 0 : index
    %c0_6 = arith.constant 0 : index
    %19 = vector.load %arg4[%c0_5, %c0_6] : memref<1024x1024xi8, #tpu.memory_space<vmem>>, vector<1024x1024xi8>
    %20 = arith.sitofp %19 : vector<1024x1024xi8> to vector<1024x1024xbf16>
    %21 = arith.truncf %18 : vector<8x1024xf32> to vector<8x1024xbf16>
    %cst_7 = arith.constant dense<0.000000e+00> : vector<8x1024xf32>
    %22 = tpu.matmul %21, %20, %cst_7 {dimension_numbers = #tpu.dot_dimension_numbers<[1], [0], [0], [1], [0, 0, 1, 1], [], []>} : vector<8x1024xbf16>, vector<1024x1024xbf16>, vector<8x1024xf32> -> vector<8x1024xf32>
    %c0_8 = arith.constant 0 : index
    %c0_9 = arith.constant 0 : index
    %23 = vector.load %arg5[%c0_8, %c0_9] : memref<1x1024xf32, #tpu.memory_space<vmem>>, vector<1x1024xf32>
    %24 = vector.broadcast %23 : vector<1x1024xf32> to vector<8x1024xf32>
    %25 = arith.mulf %22, %24 : vector<8x1024xf32>
    %c0_10 = arith.constant 0 : index
    %c0_11 = arith.constant 0 : index
    %26 = vector.load %arg6[%c0_10, %c0_11] : memref<1x1024xf32, #tpu.memory_space<vmem>>, vector<1x1024xf32>
    %27 = vector.broadcast %26 : vector<1x1024xf32> to vector<8x1024xf32>
    %28 = arith.addf %25, %27 : vector<8x1024xf32>
    %cst_12 = arith.constant 0.000000e+00 : f32
    %29 = vector.broadcast %cst_12 : f32 to vector<8x1024xf32>
    %30 = arith.maximumf %28, %29 : vector<8x1024xf32>
    %c0_13 = arith.constant 0 : index
    %c0_14 = arith.constant 0 : index
    %31 = vector.load %arg7[%c0_13, %c0_14] : memref<1x1024xbf16, #tpu.memory_space<vmem>>, vector<1x1024xbf16>
    %32 = arith.extf %31 : vector<1x1024xbf16> to vector<1x1024xf32>
    %33 = vector.broadcast %32 : vector<1x1024xf32> to vector<8x1024xf32>
    %34 = arith.mulf %30, %33 : vector<8x1024xf32>
    %cst_15 = arith.constant dense<0.000000e+00> : vector<8xf32>
    %35 = vector.multi_reduction <add>, %34, %cst_15 [1] : vector<8x1024xf32> to vector<8xf32>
    %36 = vector.shape_cast %35 : vector<8xf32> to vector<8x1xf32>
    %c0_16 = arith.constant 0 : index
    %c0_17 = arith.constant 0 : index
    %37 = vector.load %arg8[%c0_16, %c0_17] : memref<1x1xf32, #tpu.memory_space<vmem>>, vector<1x1xf32>
    %38 = vector.broadcast %37 : vector<1x1xf32> to vector<8x1xf32>
    %39 = arith.addf %36, %38 : vector<8x1xf32>
    %40 = arith.negf %39 : vector<8x1xf32>
    %41 = math.exp %40 : vector<8x1xf32>
    %cst_18 = arith.constant 1.000000e+00 : f32
    %42 = vector.broadcast %cst_18 : f32 to vector<8x1xf32>
    %43 = arith.addf %42, %41 : vector<8x1xf32>
    %44 = arith.divf %42, %43 : vector<8x1xf32>
    %c0_19 = arith.constant 0 : index
    %c0_20 = arith.constant 0 : index
    %45 = vector.load %arg9[%c0_19, %c0_20] : memref<8x1xf32, #tpu.memory_space<vmem>>, vector<8x1xf32>
    tpu.vector_store %arg9[%c0_19, %c0_20], %44 {strides = array<i32>} : memref<8x1xf32, #tpu.memory_space<vmem>>, vector<8x1xf32>,
    return
  }
  func.func @transform_0(%arg0: i32) -> (i32, i32) {
    %c0_i32 = arith.constant 0 : i32
    %c0_i32_0 = arith.constant 0 : i32
    %c0_i32_1 = arith.constant 0 : i32
    return %c0_i32, %c0_i32_0 : i32, i32
  }
  func.func @transform_1(%arg0: i32) -> (i32, i32) {
    %c0_i32 = arith.constant 0 : i32
    %c0_i32_0 = arith.constant 0 : i32
    %c0_i32_1 = arith.constant 0 : i32
    return %c0_i32, %c0_i32_0 : i32, i32
  }
  func.func @transform_2(%arg0: i32) -> (i32, i32) {
    %c0_i32 = arith.constant 0 : i32
    %c0_i32_0 = arith.constant 0 : i32
    %c0_i32_1 = arith.constant 0 : i32
    return %c0_i32, %c0_i32_0 : i32, i32
  }
  func.func @transform_3(%arg0: i32) -> (i32, i32) {
    %c0_i32 = arith.constant 0 : i32
    %c0_i32_0 = arith.constant 0 : i32
    %c0_i32_1 = arith.constant 0 : i32
    return %c0_i32, %c0_i32_0 : i32, i32
  }
  func.func @transform_4(%arg0: i32) -> (i32, i32) {
    %c0_i32 = arith.constant 0 : i32
    %c0_i32_0 = arith.constant 0 : i32
    %c0_i32_1 = arith.constant 0 : i32
    return %c0_i32, %c0_i32_0 : i32, i32
  }
  func.func @transform_5(%arg0: i32) -> (i32, i32) {
    %c0_i32 = arith.constant 0 : i32
    %c0_i32_0 = arith.constant 0 : i32
    %c0_i32_1 = arith.constant 0 : i32
    return %c0_i32, %c0_i32_0 : i32, i32
  }
  func.func @transform_6(%arg0: i32) -> (i32, i32) {
    %c0_i32 = arith.constant 0 : i32
    %c0_i32_0 = arith.constant 0 : i32
    %c0_i32_1 = arith.constant 0 : i32
    return %c0_i32, %c0_i32_0 : i32, i32
  }
  func.func @transform_7(%arg0: i32) -> (i32, i32) {
    %c0_i32 = arith.constant 0 : i32
    %c0_i32_0 = arith.constant 0 : i32
    %c0_i32_1 = arith.constant 0 : i32
    return %c0_i32, %c0_i32_0 : i32, i32
  }
  func.func @transform_8(%arg0: i32) -> (i32, i32) {
    %c0_i32 = arith.constant 0 : i32
    %c0_i32_0 = arith.constant 0 : i32
    %c0_i32_1 = arith.constant 0 : i32
    return %c0_i32, %c0_i32_0 : i32, i32
  }
}

</mosaic_0001>

<llo_original>
// kernel: tpu_custom_call.1
$region0: #{tpu_custom_call.1}
  #allocation0 [shape = 'u32[]', space=smem, size = 0x4, offset = 0x4, fixed_abs, tag = 'smem constant byte address 0x4 - core index']
  #allocation1 [shape = 'u32[144,128]{1,0:T(1,128)}', space=vmem, size = 0x12000, scoped, tag = 'internal scratch']
  #allocation2 [shape = 'f32[1,1]{1,0:T(1,128)S(1)}', space=vmem, size = 0x200, scoped, tag = 'scoped memory for tpu_custom_call.1']
  %s0 = inlined_call_operand.vmem [shape: f32[8,2], index: 0, kind: input, shape index: {}]
  %s1 = inlined_call_operand.vmem [shape: bf16[2,1024], index: 1, kind: input, shape index: {}]
  %s2 = inlined_call_operand.hbm [shape: f32[1,1024], index: 2, kind: input, shape index: {}]
  %s3 = inlined_call_operand.hbm [shape: s8[1024,1024], index: 3, kind: input, shape index: {}]
  %s4 = inlined_call_operand.vmem [shape: f32[1,1024], index: 4, kind: input, shape index: {}]
  %s5 = inlined_call_operand.hbm [shape: f32[1,1024], index: 5, kind: input, shape index: {}]
  %s6 = inlined_call_operand.hbm [shape: bf16[1,1024], index: 6, kind: input, shape index: {}]
  %s7 = inlined_call_operand.<no memory space> [shape: f32[1,1], index: 7, kind: input, shape index: {}]
  %s8 = inlined_call_operand.vmem [shape: f32[8,1], index: 8, kind: output, shape index: {}]
  %s9 = sld [smem:[#allocation0]]
  $region58: #{tpu_custom_call.1} parent=0
    _
  %s11 = ssub.s32 1, %s9
  %s12 = scalar_select 0, %s11, %s9
  %v13 = vstv %s7
  %14 = vst [vmem:[#allocation2] sm:$0x1] %v13
  $region1: #{tpu_custom_call.1} parent=0
    #allocation3 [shape = 'u8[4096]{0}', space=vmem, size = 0x1000, scoped, tag = 'input window, operand 2, single buffered']
    #allocation4 [shape = 's32[1]{0}', space=sflag, size = 0x4, scoped, tag = 'scoped memory for tpu_custom_call.1']
    #allocation5 [shape = 'u8[1048576]{0}', space=vmem, size = 0x100000, scoped, tag = 'input window, operand 3, single buffered']
    #allocation6 [shape = 's32[1]{0}', space=sflag, size = 0x4, scoped, tag = 'scoped memory for tpu_custom_call.1']
    #allocation7 [shape = 'u8[4096]{0}', space=vmem, size = 0x1000, scoped, tag = 'input window, operand 5, single buffered']
    #allocation8 [shape = 'u8[4096]{0}', space=vmem, size = 0x1000, scoped, tag = 'input window, operand 6, single buffered']
    #allocation9 [shape = 's32[1]{0}', space=sflag, size = 0x4, scoped, tag = 'scoped memory for tpu_custom_call.1']
    %15 = vsyncpa [#allocation4], 0
    %16 = vsyncpa [#allocation6], 0
    %17 = vsyncpa [#allocation9], 0
    // Predicated region
    $region2: #{tpu_custom_call.1} parent=1 // pred_check
      _
    $region3: #{tpu_custom_call.1} parent=1 // pred_check_branch
      %19 = sbr.rel (0) target = $region5
    $region4: #{tpu_custom_call.1} parent=1 // pred_region
      _
    $region5: #{tpu_custom_call.1} parent=1 // pred_fallthru
      _
    // Predicated region
    $region6: #{tpu_custom_call.1} parent=1 // pred_check
      _
    $region7: #{tpu_custom_call.1} parent=1 // pred_check_branch
      %21 = sbr.rel (0) target = $region9
    $region8: #{tpu_custom_call.1} parent=1 // pred_region
      _
    $region9: #{tpu_custom_call.1} parent=1 // pred_fallthru
      _
    // Predicated region
    $region10: #{tpu_custom_call.1} parent=1 // pred_check
      _
    $region11: #{tpu_custom_call.1} parent=1 // pred_check_branch
      %23 = sbr.rel (0) target = $region13
    $region12: #{tpu_custom_call.1} parent=1 // pred_region
      %s25 = ssub.s32 128, 128
      %26 = vsyncadd [#allocation4], %s25
      %s28 = sshll.u32 [#allocation3], 4
      %s29 = int_to_ptr.vmem [resolvable:$true] %s28
      %31 = dma.hbm_to_vmem [thread:$0]  %s2, 128, %s29, [#allocation4]
    $region13: #{tpu_custom_call.1} parent=1 // pred_fallthru
      _
    // Predicated region
    $region14: #{tpu_custom_call.1} parent=1 // pred_check
      _
    $region15: #{tpu_custom_call.1} parent=1 // pred_check_branch
      %33 = sbr.rel (0) target = $region17
    $region16: #{tpu_custom_call.1} parent=1 // pred_region
      %s35 = ssub.s32 32768, 32768
      %36 = vsyncadd [#allocation6], %s35
      %s37 = sshll.u32 [#allocation5], 4
      %s38 = int_to_ptr.vmem [resolvable:$true] %s37
      %43 = dma.hbm_to_vmem [thread:$0]  %s3, 32768, %s38, [#allocation6], 1024, 1024, 64
    $region17: #{tpu_custom_call.1} parent=1 // pred_fallthru
      _
    // Predicated region
    $region18: #{tpu_custom_call.1} parent=1 // pred_check
      _
    $region19: #{tpu_custom_call.1} parent=1 // pred_check_branch
      %45 = sbr.rel (0) target = $region21
    $region20: #{tpu_custom_call.1} parent=1 // pred_region
      _
    $region21: #{tpu_custom_call.1} parent=1 // pred_fallthru
      _
    // Predicated region
    $region22: #{tpu_custom_call.1} parent=1 // pred_check
      _
    $region23: #{tpu_custom_call.1} parent=1 // pred_check_branch
      %47 = sbr.rel (0) target = $region25
    $region24: #{tpu_custom_call.1} parent=1 // pred_region
      %s49 = ssub.s32 128, 128
      %50 = vsyncadd [#allocation6], %s49
      %s52 = sshll.u32 [#allocation7], 4
      %s53 = int_to_ptr.vmem [resolvable:$true] %s52
      %55 = dma.hbm_to_vmem [thread:$0]  %s5, 128, %s53, [#allocation6]
    $region25: #{tpu_custom_call.1} parent=1 // pred_fallthru
      _
    // Predicated region
    $region26: #{tpu_custom_call.1} parent=1 // pred_check
      _
    $region27: #{tpu_custom_call.1} parent=1 // pred_check_branch
      %57 = sbr.rel (0) target = $region29
    $region28: #{tpu_custom_call.1} parent=1 // pred_region
      %s59 = ssub.s32 128, 128
      %60 = vsyncadd [#allocation9], %s59
      %s62 = sshll.u32 [#allocation8], 4
      %s63 = int_to_ptr.vmem [resolvable:$true] %s62
      %65 = dma.hbm_to_vmem [thread:$0]  %s6, 128, %s63, [#allocation9]
    $region29: #{tpu_custom_call.1} parent=1 // pred_fallthru
      _
    // Predicated region
    $region30: #{tpu_custom_call.1} parent=1 // pred_check
      _
    $region31: #{tpu_custom_call.1} parent=1 // pred_check_branch
      %67 = sbr.rel (0) target = $region33
    $region32: #{tpu_custom_call.1} parent=1 // pred_region
      _
    $region33: #{tpu_custom_call.1} parent=1 // pred_fallthru
      _
    // Predicated region
    $region34: #{tpu_custom_call.1} parent=1 // pred_check
      _
    $region35: #{tpu_custom_call.1} parent=1 // pred_check_branch
      %69 = sbr.rel (0) target = $region37
    $region36: #{tpu_custom_call.1} parent=1 // pred_region
      %70 = dma.done [#allocation4], 128
    $region37: #{tpu_custom_call.1} parent=1 // pred_fallthru
      _
    // Predicated region
    $region38: #{tpu_custom_call.1} parent=1 // pred_check
      _
    $region39: #{tpu_custom_call.1} parent=1 // pred_check_branch
      %72 = sbr.rel (0) target = $region41
    $region40: #{tpu_custom_call.1} parent=1 // pred_region
      %73 = dma.done [#allocation6], 32768
    $region41: #{tpu_custom_call.1} parent=1 // pred_fallthru
      _
    // Predicated region
    $region42: #{tpu_custom_call.1} parent=1 // pred_check
      _
    $region43: #{tpu_custom_call.1} parent=1 // pred_check_branch
      %75 = sbr.rel (0) target = $region45
    $region44: #{tpu_custom_call.1} parent=1 // pred_region
      %76 = dma.done [#allocation6], 128
    $region45: #{tpu_custom_call.1} parent=1 // pred_fallthru
      _
    // Predicated region
    $region46: #{tpu_custom_call.1} parent=1 // pred_check
      _
    $region47: #{tpu_custom_call.1} parent=1 // pred_check_branch
      %78 = sbr.rel (0) target = $region49
    $region48: #{tpu_custom_call.1} parent=1 // pred_region
      %79 = dma.done [#allocation9], 128
    $region49: #{tpu_custom_call.1} parent=1 // pred_fallthru
      _
    %v80 = vld [vmem:[%s0] sm:$0xff]
    %v81 = vld [vmem:[%s1] sm:$0xff]
    %v82 = vunpack.c.l.bf16 %v81
    %v83 = vunpack.c.h.bf16 %v81
    %85 = vset.pattern.permute.xlu0 0
    %86 = vperm.xlu0 %85, %v80
    %v87 = vpop.permute.xlu0 %86
    %v91 = vlaneseq
    %v92 = vshrl.u32 %v91, 7
    %v93 = vsub.s32 0, %v92
    %v94 = vrot.slane %v82, %v93
    %v95 = vlaneseq
    %v96 = vshrl.u32 %v95, 7
    %v97 = vsub.s32 2, %v96
    %v98 = vrot.slane %v82, %v97
    %v99 = vlaneseq
    %v100 = vshrl.u32 %v99, 7
    %v101 = vsub.s32 4, %v100
    %v102 = vrot.slane %v82, %v101
    %v103 = vlaneseq
    %v104 = vshrl.u32 %v103, 7
    %v105 = vsub.s32 6, %v104
    %v106 = vrot.slane %v82, %v105
    %v107 = vlaneseq
    %v108 = vshrl.u32 %v107, 7
    %v109 = vsub.s32 0, %v108
    %v110 = vrot.slane %v83, %v109
    %v111 = vlaneseq
    %v112 = vshrl.u32 %v111, 7
    %v113 = vsub.s32 2, %v112
    %v114 = vrot.slane %v83, %v113
    %v115 = vlaneseq
    %v116 = vshrl.u32 %v115, 7
    %v117 = vsub.s32 4, %v116
    %v118 = vrot.slane %v83, %v117
    %v119 = vlaneseq
    %v120 = vshrl.u32 %v119, 7
    %v121 = vsub.s32 6, %v120
    %v122 = vrot.slane %v83, %v121
    %v131 = vlaneseq
    %v132 = vshrl.u32 %v131, 7
    %v133 = vsub.s32 0, %v132
    %v134 = vrot.slane %v94, %v133
    %v135 = vlaneseq
    %v136 = vshrl.u32 %v135, 7
    %v137 = vsub.s32 0, %v136
    %v138 = vrot.slane %v98, %v137
    %v139 = vlaneseq
    %v140 = vshrl.u32 %v139, 7
    %v141 = vsub.s32 0, %v140
    %v142 = vrot.slane %v102, %v141
    %v143 = vlaneseq
    %v144 = vshrl.u32 %v143, 7
    %v145 = vsub.s32 0, %v144
    %v146 = vrot.slane %v106, %v145
    %v147 = vlaneseq
    %v148 = vshrl.u32 %v147, 7
    %v149 = vsub.s32 0, %v148
    %v150 = vrot.slane %v110, %v149
    %v151 = vlaneseq
    %v152 = vshrl.u32 %v151, 7
    %v153 = vsub.s32 0, %v152
    %v154 = vrot.slane %v114, %v153
    %v155 = vlaneseq
    %v156 = vshrl.u32 %v155, 7
    %v157 = vsub.s32 0, %v156
    %v158 = vrot.slane %v118, %v157
    %v159 = vlaneseq
    %v160 = vshrl.u32 %v159, 7
    %v161 = vsub.s32 0, %v160
    %v162 = vrot.slane %v122, %v161
    %v163 = vmul.f32 %v87, %v134
    %v164 = vmul.f32 %v87, %v138
    %v165 = vmul.f32 %v87, %v142
    %v166 = vmul.f32 %v87, %v146
    %v167 = vmul.f32 %v87, %v150
    %v168 = vmul.f32 %v87, %v154
    %v169 = vmul.f32 %v87, %v158
    %v170 = vmul.f32 %v87, %v162
    %171 = vset.pattern.permute.xlu0 1
    %172 = vperm.xlu0 %171, %v80
    %v173 = vpop.permute.xlu0 %172
    %v175 = vlaneseq
    %v176 = vshrl.u32 %v175, 7
    %v177 = vsub.s32 1, %v176
    %v178 = vrot.slane %v82, %v177
    %v179 = vlaneseq
    %v180 = vshrl.u32 %v179, 7
    %v181 = vsub.s32 3, %v180
    %v182 = vrot.slane %v82, %v181
    %v183 = vlaneseq
    %v184 = vshrl.u32 %v183, 7
    %v185 = vsub.s32 5, %v184
    %v186 = vrot.slane %v82, %v185
    %v187 = vlaneseq
    %v188 = vshrl.u32 %v187, 7
    %v189 = vsub.s32 7, %v188
    %v190 = vrot.slane %v82, %v189
    %v191 = vlaneseq
    %v192 = vshrl.u32 %v191, 7
    %v193 = vsub.s32 1, %v192
    %v194 = vrot.slane %v83, %v193
    %v195 = vlaneseq
    %v196 = vshrl.u32 %v195, 7
    %v197 = vsub.s32 3, %v196
    %v198 = vrot.slane %v83, %v197
    %v199 = vlaneseq
    %v200 = vshrl.u32 %v199, 7
    %v201 = vsub.s32 5, %v200
    %v202 = vrot.slane %v83, %v201
    %v203 = vlaneseq
    %v204 = vshrl.u32 %v203, 7
    %v205 = vsub.s32 7, %v204
    %v206 = vrot.slane %v83, %v205
    %v215 = vlaneseq
    %v216 = vshrl.u32 %v215, 7
    %v217 = vsub.s32 1, %v216
    %v218 = vrot.slane %v178, %v217
    %v219 = vlaneseq
    %v220 = vshrl.u32 %v219, 7
    %v221 = vsub.s32 1, %v220
    %v222 = vrot.slane %v182, %v221
    %v223 = vlaneseq
    %v224 = vshrl.u32 %v223, 7
    %v225 = vsub.s32 1, %v224
    %v226 = vrot.slane %v186, %v225
    %v227 = vlaneseq
    %v228 = vshrl.u32 %v227, 7
    %v229 = vsub.s32 1, %v228
    %v230 = vrot.slane %v190, %v229
    %v231 = vlaneseq
    %v232 = vshrl.u32 %v231, 7
    %v233 = vsub.s32 1, %v232
    %v234 = vrot.slane %v194, %v233
    %v235 = vlaneseq
    %v236 = vshrl.u32 %v235, 7
    %v237 = vsub.s32 1, %v236
    %v238 = vrot.slane %v198, %v237
    %v239 = vlaneseq
    %v240 = vshrl.u32 %v239, 7
    %v241 = vsub.s32 1, %v240
    %v242 = vrot.slane %v202, %v241
    %v243 = vlaneseq
    %v244 = vshrl.u32 %v243, 7
    %v245 = vsub.s32 1, %v244
    %v246 = vrot.slane %v206, %v245
    %v247 = vmul.f32 %v173, %v218
    %v248 = vmul.f32 %v173, %v222
    %v249 = vmul.f32 %v173, %v226
    %v250 = vmul.f32 %v173, %v230
    %v251 = vmul.f32 %v173, %v234
    %v252 = vmul.f32 %v173, %v238
    %v253 = vmul.f32 %v173, %v242
    %v254 = vmul.f32 %v173, %v246
    %v255 = vadd.f32 %v163, %v247
    %v256 = vadd.f32 %v164, %v248
    %v257 = vadd.f32 %v165, %v249
    %v258 = vadd.f32 %v166, %v250
    %v259 = vadd.f32 %v167, %v251
    %v260 = vadd.f32 %v168, %v252
    %v261 = vadd.f32 %v169, %v253
    %v262 = vadd.f32 %v170, %v254
    %v263 = vld [vmem:[#allocation3] sm:$0xff]
    %v265 = vlaneseq
    %v266 = vshrl.u32 %v265, 7
    %v267 = vsub.s32 0, %v266
    %v268 = vrot.slane %v263, %v267
    %v269 = vlaneseq
    %v270 = vshrl.u32 %v269, 7
    %v271 = vsub.s32 1, %v270
    %v272 = vrot.slane %v263, %v271
    %v273 = vlaneseq
    %v274 = vshrl.u32 %v273, 7
    %v275 = vsub.s32 2, %v274
    %v276 = vrot.slane %v263, %v275
    %v277 = vlaneseq
    %v278 = vshrl.u32 %v277, 7
    %v279 = vsub.s32 3, %v278
    %v280 = vrot.slane %v263, %v279
    %v281 = vlaneseq
    %v282 = vshrl.u32 %v281, 7
    %v283 = vsub.s32 4, %v282
    %v284 = vrot.slane %v263, %v283
    %v285 = vlaneseq
    %v286 = vshrl.u32 %v285, 7
    %v287 = vsub.s32 5, %v286
    %v288 = vrot.slane %v263, %v287
    %v289 = vlaneseq
    %v290 = vshrl.u32 %v289, 7
    %v291 = vsub.s32 6, %v290
    %v292 = vrot.slane %v263, %v291
    %v293 = vlaneseq
    %v294 = vshrl.u32 %v293, 7
    %v295 = vsub.s32 7, %v294
    %v296 = vrot.slane %v263, %v295
    %v305 = vadd.f32 %v255, %v268
    %v306 = vadd.f32 %v256, %v272
    %v307 = vadd.f32 %v257, %v276
    %v308 = vadd.f32 %v258, %v280
    %v309 = vadd.f32 %v259, %v284
    %v310 = vadd.f32 %v260, %v288
    %v311 = vadd.f32 %v261, %v292
    %v312 = vadd.f32 %v262, %v296
    %v313 = vmax.f32 %v305, 0.0
    %v314 = vmax.f32 %v306, 0.0
    %v315 = vmax.f32 %v307, 0.0
    %v316 = vmax.f32 %v308, 0.0
    %v317 = vmax.f32 %v309, 0.0
    %v318 = vmax.f32 %v310, 0.0
    %v319 = vmax.f32 %v311, 0.0
    %v320 = vmax.f32 %v312, 0.0
    %v321 = vld [vmem:[#allocation5] sm:$0xff]
    %v322 = vld [vmem:[#allocation5 + $0x8] sm:$0xff]
    %v323 = vld [vmem:[#allocation5 + $0x10] sm:$0xff]
    %v324 = vld [vmem:[#allocation5 + $0x18] sm:$0xff]
    %v325 = vld [vmem:[#allocation5 + $0x20] sm:$0xff]
    %v326 = vld [vmem:[#allocation5 + $0x28] sm:$0xff]
    %v327 = vld [vmem:[#allocation5 + $0x30] sm:$0xff]
    %v328 = vld [vmem:[#allocation5 + $0x38] sm:$0xff]
    %v329 = vld [vmem:[#allocation5 + $0x40] sm:$0xff]
    %v330 = vld [vmem:[#allocation5 + $0x48] sm:$0xff]
    %v331 = vld [vmem:[#allocation5 + $0x50] sm:$0xff]
    %v332 = vld [vmem:[#allocation5 + $0x58] sm:$0xff]
    %v333 = vld [vmem:[#allocation5 + $0x60] sm:$0xff]
    %v334 = vld [vmem:[#allocation5 + $0x68] sm:$0xff]
    %v335 = vld [vmem:[#allocation5 + $0x70] sm:$0xff]
    %v336 = vld [vmem:[#allocation5 + $0x78] sm:$0xff]
    %v337 = vld [vmem:[#allocation5 + $0x80] sm:$0xff]
    %v338 = vld [vmem:[#allocation5 + $0x88] sm:$0xff]
    %v339 = vld [vmem:[#allocation5 + $0x90] sm:$0xff]
    %v340 = vld [vmem:[#allocation5 + $0x98] sm:$0xff]
    %v341 = vld [vmem:[#allocation5 + $0xa0] sm:$0xff]
    %v342 = vld [vmem:[#allocation5 + $0xa8] sm:$0xff]
    %v343 = vld [vmem:[#allocation5 + $0xb0] sm:$0xff]
    %v344 = vld [vmem:[#allocation5 + $0xb8] sm:$0xff]
    %v345 = vld [vmem:[#allocation5 + $0xc0] sm:$0xff]
    %v346 = vld [vmem:[#allocation5 + $0xc8] sm:$0xff]
    %v347 = vld [vmem:[#allocation5 + $0xd0] sm:$0xff]
    %v348 = vld [vmem:[#allocation5 + $0xd8] sm:$0xff]
    %v349 = vld [vmem:[#allocation5 + $0xe0] sm:$0xff]
    %v350 = vld [vmem:[#allocation5 + $0xe8] sm:$0xff]
    %v351 = vld [vmem:[#allocation5 + $0xf0] sm:$0xff]
    %v352 = vld [vmem:[#allocation5 + $0xf8] sm:$0xff]
    %v353 = vld [vmem:[#allocation5 + $0x100] sm:$0xff]
    %v354 = vld [vmem:[#allocation5 + $0x108] sm:$0xff]
    %v355 = vld [vmem:[#allocation5 + $0x110] sm:$0xff]
    %v356 = vld [vmem:[#allocation5 + $0x118] sm:$0xff]
    %v357 = vld [vmem:[#allocation5 + $0x120] sm:$0xff]
    %v358 = vld [vmem:[#allocation5 + $0x128] sm:$0xff]
    %v359 = vld [vmem:[#allocation5 + $0x130] sm:$0xff]
    %v360 = vld [vmem:[#allocation5 + $0x138] sm:$0xff]
    %v361 = vld [vmem:[#allocation5 + $0x140] sm:$0xff]
    %v362 = vld [vmem:[#allocation5 + $0x148] sm:$0xff]
    %v363 = vld [vmem:[#allocation5 + $0x150] sm:$0xff]
    %v364 = vld [vmem:[#allocation5 + $0x158] sm:$0xff]
    %v365 = vld [vmem:[#allocation5 + $0x160] sm:$0xff]
    %v366 = vld [vmem:[#allocation5 + $0x168] sm:$0xff]
    %v367 = vld [vmem:[#allocation5 + $0x170] sm:$0xff]
    %v368 = vld [vmem:[#allocation5 + $0x178] sm:$0xff]
    %v369 = vld [vmem:[#allocation5 + $0x180] sm:$0xff]
    %v370 = vld [vmem:[#allocation5 + $0x188] sm:$0xff]
    %v371 = vld [vmem:[#allocation5 + $0x190] sm:$0xff]
    %v372 = vld [vmem:[#allocation5 + $0x198] sm:$0xff]
    %v373 = vld [vmem:[#allocation5 + $0x1a0] sm:$0xff]
    %v374 = vld [vmem:[#allocation5 + $0x1a8] sm:$0xff]
    %v375 = vld [vmem:[#allocation5 + $0x1b0] sm:$0xff]
    %v376 = vld [vmem:[#allocation5 + $0x1b8] sm:$0xff]
    %v377 = vld [vmem:[#allocation5 + $0x1c0] sm:$0xff]
    %v378 = vld [vmem:[#allocation5 + $0x1c8] sm:$0xff]
    %v379 = vld [vmem:[#allocation5 + $0x1d0] sm:$0xff]
    %v380 = vld [vmem:[#allocation5 + $0x1d8] sm:$0xff]
    %v381 = vld [vmem:[#allocation5 + $0x1e0] sm:$0xff]
    %v382 = vld [vmem:[#allocation5 + $0x1e8] sm:$0xff]
    %v383 = vld [vmem:[#allocation5 + $0x1f0] sm:$0xff]
    %v384 = vld [vmem:[#allocation5 + $0x1f8] sm:$0xff]
    %v385 = vld [vmem:[#allocation5 + $0x200] sm:$0xff]
    %v386 = vld [vmem:[#allocation5 + $0x208] sm:$0xff]
    %v387 = vld [vmem:[#allocation5 + $0x210] sm:$0xff]
    %v388 = vld [vmem:[#allocation5 + $0x218] sm:$0xff]
    %v389 = vld [vmem:[#allocation5 + $0x220] sm:$0xff]
    %v390 = vld [vmem:[#allocation5 + $0x228] sm:$0xff]
    %v391 = vld [vmem:[#allocation5 + $0x230] sm:$0xff]
    %v392 = vld [vmem:[#allocation5 + $0x238] sm:$0xff]
    %v393 = vld [vmem:[#allocation5 + $0x240] sm:$0xff]
    %v394 = vld [vmem:[#allocation5 + $0x248] sm:$0xff]
    %v395 = vld [vmem:[#allocation5 + $0x250] sm:$0xff]
    %v396 = vld [vmem:[#allocation5 + $0x258] sm:$0xff]
    %v397 = vld [vmem:[#allocation5 + $0x260] sm:$0xff]
    %v398 = vld [vmem:[#allocation5 + $0x268] sm:$0xff]
    %v399 = vld [vmem:[#allocation5 + $0x270] sm:$0xff]
    %v400 = vld [vmem:[#allocation5 + $0x278] sm:$0xff]
    %v401 = vld [vmem:[#allocation5 + $0x280] sm:$0xff]
    %v402 = vld [vmem:[#allocation5 + $0x288] sm:$0xff]
    %v403 = vld [vmem:[#allocation5 + $0x290] sm:$0xff]
    %v404 = vld [vmem:[#allocation5 + $0x298] sm:$0xff]
    %v405 = vld [vmem:[#allocation5 + $0x2a0] sm:$0xff]
    %v406 = vld [vmem:[#allocation5 + $0x2a8] sm:$0xff]
    %v407 = vld [vmem:[#allocation5 + $0x2b0] sm:$0xff]
    %v408 = vld [vmem:[#allocation5 + $0x2b8] sm:$0xff]
    %v409 = vld [vmem:[#allocation5 + $0x2c0] sm:$0xff]
    %v410 = vld [vmem:[#allocation5 + $0x2c8] sm:$0xff]
    %v411 = vld [vmem:[#allocation5 + $0x2d0] sm:$0xff]
    %v412 = vld [vmem:[#allocation5 + $0x2d8] sm:$0xff]
    %v413 = vld [vmem:[#allocation5 + $0x2e0] sm:$0xff]
    %v414 = vld [vmem:[#allocation5 + $0x2e8] sm:$0xff]
    %v415 = vld [vmem:[#allocation5 + $0x2f0] sm:$0xff]
    %v416 = vld [vmem:[#allocation5 + $0x2f8] sm:$0xff]
    %v417 = vld [vmem:[#allocation5 + $0x300] sm:$0xff]
    %v418 = vld [vmem:[#allocation5 + $0x308] sm:$0xff]
    %v419 = vld [vmem:[#allocation5 + $0x310] sm:$0xff]
    %v420 = vld [vmem:[#allocation5 + $0x318] sm:$0xff]
    %v421 = vld [vmem:[#allocation5 + $0x320] sm:$0xff]
    %v422 = vld [vmem:[#allocation5 + $0x328] sm:$0xff]
    %v423 = vld [vmem:[#allocation5 + $0x330] sm:$0xff]
    %v424 = vld [vmem:[#allocation5 + $0x338] sm:$0xff]
    %v425 = vld [vmem:[#allocation5 + $0x340] sm:$0xff]
    %v426 = vld [vmem:[#allocation5 + $0x348] sm:$0xff]
    %v427 = vld [vmem:[#allocation5 + $0x350] sm:$0xff]
    %v428 = vld [vmem:[#allocation5 + $0x358] sm:$0xff]
    %v429 = vld [vmem:[#allocation5 + $0x360] sm:$0xff]
    %v430 = vld [vmem:[#allocation5 + $0x368] sm:$0xff]
    %v431 = vld [vmem:[#allocation5 + $0x370] sm:$0xff]
    %v432 = vld [vmem:[#allocation5 + $0x378] sm:$0xff]
    %v433 = vld [vmem:[#allocation5 + $0x380] sm:$0xff]
    %v434 = vld [vmem:[#allocation5 + $0x388] sm:$0xff]
    %v435 = vld [vmem:[#allocation5 + $0x390] sm:$0xff]
    %v436 = vld [vmem:[#allocation5 + $0x398] sm:$0xff]
    %v437 = vld [vmem:[#allocation5 + $0x3a0] sm:$0xff]
    %v438 = vld [vmem:[#allocation5 + $0x3a8] sm:$0xff]
    %v439 = vld [vmem:[#allocation5 + $0x3b0] sm:$0xff]
    %v440 = vld [vmem:[#allocation5 + $0x3b8] sm:$0xff]
    %v441 = vld [vmem:[#allocation5 + $0x3c0] sm:$0xff]
    %v442 = vld [vmem:[#allocation5 + $0x3c8] sm:$0xff]
    %v443 = vld [vmem:[#allocation5 + $0x3d0] sm:$0xff]
    %v444 = vld [vmem:[#allocation5 + $0x3d8] sm:$0xff]
    %v445 = vld [vmem:[#allocation5 + $0x3e0] sm:$0xff]
    %v446 = vld [vmem:[#allocation5 + $0x3e8] sm:$0xff]
    %v447 = vld [vmem:[#allocation5 + $0x3f0] sm:$0xff]
    %v448 = vld [vmem:[#allocation5 + $0x3f8] sm:$0xff]
    %v449 = vld [vmem:[#allocation5 + $0x400] sm:$0xff]
    %v450 = vld [vmem:[#allocation5 + $0x408] sm:$0xff]
    %v451 = vld [vmem:[#allocation5 + $0x410] sm:$0xff]
    %v452 = vld [vmem:[#allocation5 + $0x418] sm:$0xff]
    %v453 = vld [vmem:[#allocation5 + $0x420] sm:$0xff]
    %v454 = vld [vmem:[#allocation5 + $0x428] sm:$0xff]
    %v455 = vld [vmem:[#allocation5 + $0x430] sm:$0xff]
    %v456 = vld [vmem:[#allocation5 + $0x438] sm:$0xff]
    %v457 = vld [vmem:[#allocation5 + $0x440] sm:$0xff]
    %v458 = vld [vmem:[#allocation5 + $0x448] sm:$0xff]
    %v459 = vld [vmem:[#allocation5 + $0x450] sm:$0xff]
    %v460 = vld [vmem:[#allocation5 + $0x458] sm:$0xff]
    %v461 = vld [vmem:[#allocation5 + $0x460] sm:$0xff]
    %v462 = vld [vmem:[#allocation5 + $0x468] sm:$0xff]
    %v463 = vld [vmem:[#allocation5 + $0x470] sm:$0xff]
    %v464 = vld [vmem:[#allocation5 + $0x478] sm:$0xff]
    %v465 = vld [vmem:[#allocation5 + $0x480] sm:$0xff]
    %v466 = vld [vmem:[#allocation5 + $0x488] sm:$0xff]
    %v467 = vld [vmem:[#allocation5 + $0x490] sm:$0xff]
    %v468 = vld [vmem:[#allocation5 + $0x498] sm:$0xff]
    %v469 = vld [vmem:[#allocation5 + $0x4a0] sm:$0xff]
    %v470 = vld [vmem:[#allocation5 + $0x4a8] sm:$0xff]
    %v471 = vld [vmem:[#allocation5 + $0x4b0] sm:$0xff]
    %v472 = vld [vmem:[#allocation5 + $0x4b8] sm:$0xff]
    %v473 = vld [vmem:[#allocation5 + $0x4c0] sm:$0xff]
    %v474 = vld [vmem:[#allocation5 + $0x4c8] sm:$0xff]
    %v475 = vld [vmem:[#allocation5 + $0x4d0] sm:$0xff]
    %v476 = vld [vmem:[#allocation5 + $0x4d8] sm:$0xff]
    %v477 = vld [vmem:[#allocation5 + $0x4e0] sm:$0xff]
    %v478 = vld [vmem:[#allocation5 + $0x4e8] sm:$0xff]
    %v479 = vld [vmem:[#allocation5 + $0x4f0] sm:$0xff]
    %v480 = vld [vmem:[#allocation5 + $0x4f8] sm:$0xff]
    %v481 = vld [vmem:[#allocation5 + $0x500] sm:$0xff]
    %v482 = vld [vmem:[#allocation5 + $0x508] sm:$0xff]
    %v483 = vld [vmem:[#allocation5 + $0x510] sm:$0xff]
    %v484 = vld [vmem:[#allocation5 + $0x518] sm:$0xff]
    %v485 = vld [vmem:[#allocation5 + $0x520] sm:$0xff]
    %v486 = vld [vmem:[#allocation5 + $0x528] sm:$0xff]
    %v487 = vld [vmem:[#allocation5 + $0x530] sm:$0xff]
    %v488 = vld [vmem:[#allocation5 + $0x538] sm:$0xff]
    %v489 = vld [vmem:[#allocation5 + $0x540] sm:$0xff]
    %v490 = vld [vmem:[#allocation5 + $0x548] sm:$0xff]
    %v491 = vld [vmem:[#allocation5 + $0x550] sm:$0xff]
    %v492 = vld [vmem:[#allocation5 + $0x558] sm:$0xff]
    %v493 = vld [vmem:[#allocation5 + $0x560] sm:$0xff]
    %v494 = vld [vmem:[#allocation5 + $0x568] sm:$0xff]
    %v495 = vld [vmem:[#allocation5 + $0x570] sm:$0xff]
    %v496 = vld [vmem:[#allocation5 + $0x578] sm:$0xff]
    %v497 = vld [vmem:[#allocation5 + $0x580] sm:$0xff]
    %v498 = vld [vmem:[#allocation5 + $0x588] sm:$0xff]
    %v499 = vld [vmem:[#allocation5 + $0x590] sm:$0xff]
    %v500 = vld [vmem:[#allocation5 + $0x598] sm:$0xff]
    %v501 = vld [vmem:[#allocation5 + $0x5a0] sm:$0xff]
    %v502 = vld [vmem:[#allocation5 + $0x5a8] sm:$0xff]
    %v503 = vld [vmem:[#allocation5 + $0x5b0] sm:$0xff]
    %v504 = vld [vmem:[#allocation5 + $0x5b8] sm:$0xff]
    %v505 = vld [vmem:[#allocation5 + $0x5c0] sm:$0xff]
    %v506 = vld [vmem:[#allocation5 + $0x5c8] sm:$0xff]
    %v507 = vld [vmem:[#allocation5 + $0x5d0] sm:$0xff]
    %v508 = vld [vmem:[#allocation5 + $0x5d8] sm:$0xff]
    %v509 = vld [vmem:[#allocation5 + $0x5e0] sm:$0xff]
    %v510 = vld [vmem:[#allocation5 + $0x5e8] sm:$0xff]
    %v511 = vld [vmem:[#allocation5 + $0x5f0] sm:$0xff]
    %v512 = vld [vmem:[#allocation5 + $0x5f8] sm:$0xff]
    %v513 = vld [vmem:[#allocation5 + $0x600] sm:$0xff]
    %v514 = vld [vmem:[#allocation5 + $0x608] sm:$0xff]
    %v515 = vld [vmem:[#allocation5 + $0x610] sm:$0xff]
    %v516 = vld [vmem:[#allocation5 + $0x618] sm:$0xff]
    %v517 = vld [vmem:[#allocation5 + $0x620] sm:$0xff]
    %v518 = vld [vmem:[#allocation5 + $0x628] sm:$0xff]
    %v519 = vld [vmem:[#allocation5 + $0x630] sm:$0xff]
    %v520 = vld [vmem:[#allocation5 + $0x638] sm:$0xff]
    %v521 = vld [vmem:[#allocation5 + $0x640] sm:$0xff]
    %v522 = vld [vmem:[#allocation5 + $0x648] sm:$0xff]
    %v523 = vld [vmem:[#allocation5 + $0x650] sm:$0xff]
    %v524 = vld [vmem:[#allocation5 + $0x658] sm:$0xff]
    %v525 = vld [vmem:[#allocation5 + $0x660] sm:$0xff]
    %v526 = vld [vmem:[#allocation5 + $0x668] sm:$0xff]
    %v527 = vld [vmem:[#allocation5 + $0x670] sm:$0xff]
    %v528 = vld [vmem:[#allocation5 + $0x678] sm:$0xff]
    %v529 = vld [vmem:[#allocation5 + $0x680] sm:$0xff]
    %v530 = vld [vmem:[#allocation5 + $0x688] sm:$0xff]
    %v531 = vld [vmem:[#allocation5 + $0x690] sm:$0xff]
    %v532 = vld [vmem:[#allocation5 + $0x698] sm:$0xff]
    %v533 = vld [vmem:[#allocation5 + $0x6a0] sm:$0xff]
    %v534 = vld [vmem:[#allocation5 + $0x6a8] sm:$0xff]
    %v535 = vld [vmem:[#allocation5 + $0x6b0] sm:$0xff]
    %v536 = vld [vmem:[#allocation5 + $0x6b8] sm:$0xff]
    %v537 = vld [vmem:[#allocation5 + $0x6c0] sm:$0xff]
    %v538 = vld [vmem:[#allocation5 + $0x6c8] sm:$0xff]
    %v539 = vld [vmem:[#allocation5 + $0x6d0] sm:$0xff]
    %v540 = vld [vmem:[#allocation5 + $0x6d8] sm:$0xff]
    %v541 = vld [vmem:[#allocation5 + $0x6e0] sm:$0xff]
    %v542 = vld [vmem:[#allocation5 + $0x6e8] sm:$0xff]
    %v543 = vld [vmem:[#allocation5 + $0x6f0] sm:$0xff]
    %v544 = vld [vmem:[#allocation5 + $0x6f8] sm:$0xff]
    %v545 = vld [vmem:[#allocation5 + $0x700] sm:$0xff]
    %v546 = vld [vmem:[#allocation5 + $0x708] sm:$0xff]
    %v547 = vld [vmem:[#allocation5 + $0x710] sm:$0xff]
    %v548 = vld [vmem:[#allocation5 + $0x718] sm:$0xff]
    %v549 = vld [vmem:[#allocation5 + $0x720] sm:$0xff]
    %v550 = vld [vmem:[#allocation5 + $0x728] sm:$0xff]
    %v551 = vld [vmem:[#allocation5 + $0x730] sm:$0xff]
    %v552 = vld [vmem:[#allocation5 + $0x738] sm:$0xff]
    %v553 = vld [vmem:[#allocation5 + $0x740] sm:$0xff]
    %v554 = vld [vmem:[#allocation5 + $0x748] sm:$0xff]
    %v555 = vld [vmem:[#allocation5 + $0x750] sm:$0xff]
    %v556 = vld [vmem:[#allocation5 + $0x758] sm:$0xff]
    %v557 = vld [vmem:[#allocation5 + $0x760] sm:$0xff]
    %v558 = vld [vmem:[#allocation5 + $0x768] sm:$0xff]
    %v559 = vld [vmem:[#allocation5 + $0x770] sm:$0xff]
    %v560 = vld [vmem:[#allocation5 + $0x778] sm:$0xff]
    %v561 = vld [vmem:[#allocation5 + $0x780] sm:$0xff]
    %v562 = vld [vmem:[#allocation5 + $0x788] sm:$0xff]
    %v563 = vld [vmem:[#allocation5 + $0x790] sm:$0xff]
    %v564 = vld [vmem:[#allocation5 + $0x798] sm:$0xff]
    %v565 = vld [vmem:[#allocation5 + $0x7a0] sm:$0xff]
    %v566 = vld [vmem:[#allocation5 + $0x7a8] sm:$0xff]
    %v567 = vld [vmem:[#allocation5 + $0x7b0] sm:$0xff]
    %v568 = vld [vmem:[#allocation5 + $0x7b8] sm:$0xff]
    %v569 = vld [vmem:[#allocation5 + $0x7c0] sm:$0xff]
    %v570 = vld [vmem:[#allocation5 + $0x7c8] sm:$0xff]
    %v571 = vld [vmem:[#allocation5 + $0x7d0] sm:$0xff]
    %v572 = vld [vmem:[#allocation5 + $0x7d8] sm:$0xff]
    %v573 = vld [vmem:[#allocation5 + $0x7e0] sm:$0xff]
    %v574 = vld [vmem:[#allocation5 + $0x7e8] sm:$0xff]
    %v575 = vld [vmem:[#allocation5 + $0x7f0] sm:$0xff]
    %v576 = vld [vmem:[#allocation5 + $0x7f8] sm:$0xff]
    %v577 = vunpack.c.l.s8.bf16 %v321
    %v578 = vunpack.c.l.s8.bf16 %v322
    %v579 = vunpack.c.l.s8.bf16 %v323
    %v580 = vunpack.c.l.s8.bf16 %v324
    %v581 = vunpack.c.l.s8.bf16 %v325
    %v582 = vunpack.c.l.s8.bf16 %v326
    %v583 = vunpack.c.l.s8.bf16 %v327
    %v584 = vunpack.c.l.s8.bf16 %v328
    %v585 = vunpack.c.h.s8.bf16 %v321
    %v586 = vunpack.c.h.s8.bf16 %v322
    %v587 = vunpack.c.h.s8.bf16 %v323
    %v588 = vunpack.c.h.s8.bf16 %v324
    %v589 = vunpack.c.h.s8.bf16 %v325
    %v590 = vunpack.c.h.s8.bf16 %v326
    %v591 = vunpack.c.h.s8.bf16 %v327
    %v592 = vunpack.c.h.s8.bf16 %v328
    %v593 = vunpack.c.l.s8.bf16 %v329
    %v594 = vunpack.c.l.s8.bf16 %v330
    %v595 = vunpack.c.l.s8.bf16 %v331
    %v596 = vunpack.c.l.s8.bf16 %v332
    %v597 = vunpack.c.l.s8.bf16 %v333
    %v598 = vunpack.c.l.s8.bf16 %v334
    %v599 = vunpack.c.l.s8.bf16 %v335
    %v600 = vunpack.c.l.s8.bf16 %v336
    %v601 = vunpack.c.h.s8.bf16 %v329
    %v602 = vunpack.c.h.s8.bf16 %v330
    %v603 = vunpack.c.h.s8.bf16 %v331
    %v604 = vunpack.c.h.s8.bf16 %v332
    %v605 = vunpack.c.h.s8.bf16 %v333
    %v606 = vunpack.c.h.s8.bf16 %v334
    %v607 = vunpack.c.h.s8.bf16 %v335
    %v608 = vunpack.c.h.s8.bf16 %v336
    %v609 = vunpack.c.l.s8.bf16 %v337
    %v610 = vunpack.c.l.s8.bf16 %v338
    %v611 = vunpack.c.l.s8.bf16 %v339
    %v612 = vunpack.c.l.s8.bf16 %v340
    %v613 = vunpack.c.l.s8.bf16 %v341
    %v614 = vunpack.c.l.s8.bf16 %v342
    %v615 = vunpack.c.l.s8.bf16 %v343
    %v616 = vunpack.c.l.s8.bf16 %v344
    %v617 = vunpack.c.h.s8.bf16 %v337
    %v618 = vunpack.c.h.s8.bf16 %v338
    %v619 = vunpack.c.h.s8.bf16 %v339
    %v620 = vunpack.c.h.s8.bf16 %v340
    %v621 = vunpack.c.h.s8.bf16 %v341
    %v622 = vunpack.c.h.s8.bf16 %v342
    %v623 = vunpack.c.h.s8.bf16 %v343
    %v624 = vunpack.c.h.s8.bf16 %v344
    %v625 = vunpack.c.l.s8.bf16 %v345
    %v626 = vunpack.c.l.s8.bf16 %v346
    %v627 = vunpack.c.l.s8.bf16 %v347
    %v628 = vunpack.c.l.s8.bf16 %v348
    %v629 = vunpack.c.l.s8.bf16 %v349
    %v630 = vunpack.c.l.s8.bf16 %v350
    %v631 = vunpack.c.l.s8.bf16 %v351
    %v632 = vunpack.c.l.s8.bf16 %v352
    %v633 = vunpack.c.h.s8.bf16 %v345
    %v634 = vunpack.c.h.s8.bf16 %v346
    %v635 = vunpack.c.h.s8.bf16 %v347
    %v636 = vunpack.c.h.s8.bf16 %v348
    %v637 = vunpack.c.h.s8.bf16 %v349
    %v638 = vunpack.c.h.s8.bf16 %v350
    %v639 = vunpack.c.h.s8.bf16 %v351
    %v640 = vunpack.c.h.s8.bf16 %v352
    %v641 = vunpack.c.l.s8.bf16 %v353
    %v642 = vunpack.c.l.s8.bf16 %v354
    %v643 = vunpack.c.l.s8.bf16 %v355
    %v644 = vunpack.c.l.s8.bf16 %v356
    %v645 = vunpack.c.l.s8.bf16 %v357
    %v646 = vunpack.c.l.s8.bf16 %v358
    %v647 = vunpack.c.l.s8.bf16 %v359
    %v648 = vunpack.c.l.s8.bf16 %v360
    %v649 = vunpack.c.h.s8.bf16 %v353
    %v650 = vunpack.c.h.s8.bf16 %v354
    %v651 = vunpack.c.h.s8.bf16 %v355
    %v652 = vunpack.c.h.s8.bf16 %v356
    %v653 = vunpack.c.h.s8.bf16 %v357
    %v654 = vunpack.c.h.s8.bf16 %v358
    %v655 = vunpack.c.h.s8.bf16 %v359
    %v656 = vunpack.c.h.s8.bf16 %v360
    %v657 = vunpack.c.l.s8.bf16 %v361
    %v658 = vunpack.c.l.s8.bf16 %v362
    %v659 = vunpack.c.l.s8.bf16 %v363
    %v660 = vunpack.c.l.s8.bf16 %v364
    %v661 = vunpack.c.l.s8.bf16 %v365
    %v662 = vunpack.c.l.s8.bf16 %v366
    %v663 = vunpack.c.l.s8.bf16 %v367
    %v664 = vunpack.c.l.s8.bf16 %v368
    %v665 = vunpack.c.h.s8.bf16 %v361
    %v666 = vunpack.c.h.s8.bf16 %v362
    %v667 = vunpack.c.h.s8.bf16 %v363
    %v668 = vunpack.c.h.s8.bf16 %v364
    %v669 = vunpack.c.h.s8.bf16 %v365
    %v670 = vunpack.c.h.s8.bf16 %v366
    %v671 = vunpack.c.h.s8.bf16 %v367
    %v672 = vunpack.c.h.s8.bf16 %v368
    %v673 = vunpack.c.l.s8.bf16 %v369
    %v674 = vunpack.c.l.s8.bf16 %v370
    %v675 = vunpack.c.l.s8.bf16 %v371
    %v676 = vunpack.c.l.s8.bf16 %v372
    %v677 = vunpack.c.l.s8.bf16 %v373
    %v678 = vunpack.c.l.s8.bf16 %v374
    %v679 = vunpack.c.l.s8.bf16 %v375
    %v680 = vunpack.c.l.s8.bf16 %v376
    %v681 = vunpack.c.h.s8.bf16 %v369
    %v682 = vunpack.c.h.s8.bf16 %v370
    %v683 = vunpack.c.h.s8.bf16 %v371
    %v684 = vunpack.c.h.s8.bf16 %v372
    %v685 = vunpack.c.h.s8.bf16 %v373
    %v686 = vunpack.c.h.s8.bf16 %v374
    %v687 = vunpack.c.h.s8.bf16 %v375
    %v688 = vunpack.c.h.s8.bf16 %v376
    %v689 = vunpack.c.l.s8.bf16 %v377
    %v690 = vunpack.c.l.s8.bf16 %v378
    %v691 = vunpack.c.l.s8.bf16 %v379
    %v692 = vunpack.c.l.s8.bf16 %v380
    %v693 = vunpack.c.l.s8.bf16 %v381
    %v694 = vunpack.c.l.s8.bf16 %v382
    %v695 = vunpack.c.l.s8.bf16 %v383
    %v696 = vunpack.c.l.s8.bf16 %v384
    %v697 = vunpack.c.h.s8.bf16 %v377
    %v698 = vunpack.c.h.s8.bf16 %v378
    %v699 = vunpack.c.h.s8.bf16 %v379
    %v700 = vunpack.c.h.s8.bf16 %v380
    %v701 = vunpack.c.h.s8.bf16 %v381
    %v702 = vunpack.c.h.s8.bf16 %v382
    %v703 = vunpack.c.h.s8.bf16 %v383
    %v704 = vunpack.c.h.s8.bf16 %v384
    %v705 = vunpack.c.l.s8.bf16 %v385
    %v706 = vunpack.c.l.s8.bf16 %v386
    %v707 = vunpack.c.l.s8.bf16 %v387
    %v708 = vunpack.c.l.s8.bf16 %v388
    %v709 = vunpack.c.l.s8.bf16 %v389
    %v710 = vunpack.c.l.s8.bf16 %v390
    %v711 = vunpack.c.l.s8.bf16 %v391
    %v712 = vunpack.c.l.s8.bf16 %v392
    %v713 = vunpack.c.h.s8.bf16 %v385
    %v714 = vunpack.c.h.s8.bf16 %v386
    %v715 = vunpack.c.h.s8.bf16 %v387
    %v716 = vunpack.c.h.s8.bf16 %v388
    %v717 = vunpack.c.h.s8.bf16 %v389
    %v718 = vunpack.c.h.s8.bf16 %v390
    %v719 = vunpack.c.h.s8.bf16 %v391
    %v720 = vunpack.c.h.s8.bf16 %v392
    %v721 = vunpack.c.l.s8.bf16 %v393
    %v722 = vunpack.c.l.s8.bf16 %v394
    %v723 = vunpack.c.l.s8.bf16 %v395
    %v724 = vunpack.c.l.s8.bf16 %v396
    %v725 = vunpack.c.l.s8.bf16 %v397
    %v726 = vunpack.c.l.s8.bf16 %v398
    %v727 = vunpack.c.l.s8.bf16 %v399
    %v728 = vunpack.c.l.s8.bf16 %v400
    %v729 = vunpack.c.h.s8.bf16 %v393
    %v730 = vunpack.c.h.s8.bf16 %v394
    %v731 = vunpack.c.h.s8.bf16 %v395
    %v732 = vunpack.c.h.s8.bf16 %v396
    %v733 = vunpack.c.h.s8.bf16 %v397
    %v734 = vunpack.c.h.s8.bf16 %v398
    %v735 = vunpack.c.h.s8.bf16 %v399
    %v736 = vunpack.c.h.s8.bf16 %v400
    %v737 = vunpack.c.l.s8.bf16 %v401
    %v738 = vunpack.c.l.s8.bf16 %v402
    %v739 = vunpack.c.l.s8.bf16 %v403
    %v740 = vunpack.c.l.s8.bf16 %v404
    %v741 = vunpack.c.l.s8.bf16 %v405
    %v742 = vunpack.c.l.s8.bf16 %v406
    %v743 = vunpack.c.l.s8.bf16 %v407
    %v744 = vunpack.c.l.s8.bf16 %v408
    %v745 = vunpack.c.h.s8.bf16 %v401
    %v746 = vunpack.c.h.s8.bf16 %v402
    %v747 = vunpack.c.h.s8.bf16 %v403
    %v748 = vunpack.c.h.s8.bf16 %v404
    %v749 = vunpack.c.h.s8.bf16 %v405
    %v750 = vunpack.c.h.s8.bf16 %v406
    %v751 = vunpack.c.h.s8.bf16 %v407
    %v752 = vunpack.c.h.s8.bf16 %v408
    %v753 = vunpack.c.l.s8.bf16 %v409
    %v754 = vunpack.c.l.s8.bf16 %v410
    %v755 = vunpack.c.l.s8.bf16 %v411
    %v756 = vunpack.c.l.s8.bf16 %v412
    %v757 = vunpack.c.l.s8.bf16 %v413
    %v758 = vunpack.c.l.s8.bf16 %v414
    %v759 = vunpack.c.l.s8.bf16 %v415
    %v760 = vunpack.c.l.s8.bf16 %v416
    %v761 = vunpack.c.h.s8.bf16 %v409
    %v762 = vunpack.c.h.s8.bf16 %v410
    %v763 = vunpack.c.h.s8.bf16 %v411
    %v764 = vunpack.c.h.s8.bf16 %v412
    %v765 = vunpack.c.h.s8.bf16 %v413
    %v766 = vunpack.c.h.s8.bf16 %v414
    %v767 = vunpack.c.h.s8.bf16 %v415
    %v768 = vunpack.c.h.s8.bf16 %v416
    %v769 = vunpack.c.l.s8.bf16 %v417
    %v770 = vunpack.c.l.s8.bf16 %v418
    %v771 = vunpack.c.l.s8.bf16 %v419
    %v772 = vunpack.c.l.s8.bf16 %v420
    %v773 = vunpack.c.l.s8.bf16 %v421
    %v774 = vunpack.c.l.s8.bf16 %v422
    %v775 = vunpack.c.l.s8.bf16 %v423
    %v776 = vunpack.c.l.s8.bf16 %v424
    %v777 = vunpack.c.h.s8.bf16 %v417
    %v778 = vunpack.c.h.s8.bf16 %v418
    %v779 = vunpack.c.h.s8.bf16 %v419
    %v780 = vunpack.c.h.s8.bf16 %v420
    %v781 = vunpack.c.h.s8.bf16 %v421
    %v782 = vunpack.c.h.s8.bf16 %v422
    %v783 = vunpack.c.h.s8.bf16 %v423
    %v784 = vunpack.c.h.s8.bf16 %v424
    %v785 = vunpack.c.l.s8.bf16 %v425
    %v786 = vunpack.c.l.s8.bf16 %v426
    %v787 = vunpack.c.l.s8.bf16 %v427
    %v788 = vunpack.c.l.s8.bf16 %v428
    %v789 = vunpack.c.l.s8.bf16 %v429
    %v790 = vunpack.c.l.s8.bf16 %v430
    %v791 = vunpack.c.l.s8.bf16 %v431
    %v792 = vunpack.c.l.s8.bf16 %v432
    %v793 = vunpack.c.h.s8.bf16 %v425
    %v794 = vunpack.c.h.s8.bf16 %v426
    %v795 = vunpack.c.h.s8.bf16 %v427
    %v796 = vunpack.c.h.s8.bf16 %v428
    %v797 = vunpack.c.h.s8.bf16 %v429
    %v798 = vunpack.c.h.s8.bf16 %v430
    %v799 = vunpack.c.h.s8.bf16 %v431
    %v800 = vunpack.c.h.s8.bf16 %v432
    %v801 = vunpack.c.l.s8.bf16 %v433
    %v802 = vunpack.c.l.s8.bf16 %v434
    %v803 = vunpack.c.l.s8.bf16 %v435
    %v804 = vunpack.c.l.s8.bf16 %v436
    %v805 = vunpack.c.l.s8.bf16 %v437
    %v806 = vunpack.c.l.s8.bf16 %v438
    %v807 = vunpack.c.l.s8.bf16 %v439
    %v808 = vunpack.c.l.s8.bf16 %v440
    %v809 = vunpack.c.h.s8.bf16 %v433
    %v810 = vunpack.c.h.s8.bf16 %v434
    %v811 = vunpack.c.h.s8.bf16 %v435
    %v812 = vunpack.c.h.s8.bf16 %v436
    %v813 = vunpack.c.h.s8.bf16 %v437
    %v814 = vunpack.c.h.s8.bf16 %v438
    %v815 = vunpack.c.h.s8.bf16 %v439
    %v816 = vunpack.c.h.s8.bf16 %v440
    %v817 = vunpack.c.l.s8.bf16 %v441
    %v818 = vunpack.c.l.s8.bf16 %v442
    %v819 = vunpack.c.l.s8.bf16 %v443
    %v820 = vunpack.c.l.s8.bf16 %v444
    %v821 = vunpack.c.l.s8.bf16 %v445
    %v822 = vunpack.c.l.s8.bf16 %v446
    %v823 = vunpack.c.l.s8.bf16 %v447
    %v824 = vunpack.c.l.s8.bf16 %v448
    %v825 = vunpack.c.h.s8.bf16 %v441
    %v826 = vunpack.c.h.s8.bf16 %v442
    %v827 = vunpack.c.h.s8.bf16 %v443
    %v828 = vunpack.c.h.s8.bf16 %v444
    %v829 = vunpack.c.h.s8.bf16 %v445
    %v830 = vunpack.c.h.s8.bf16 %v446
    %v831 = vunpack.c.h.s8.bf16 %v447
    %v832 = vunpack.c.h.s8.bf16 %v448
    %v833 = vunpack.c.l.s8.bf16 %v449
    %v834 = vunpack.c.l.s8.bf16 %v450
    %v835 = vunpack.c.l.s8.bf16 %v451
    %v836 = vunpack.c.l.s8.bf16 %v452
    %v837 = vunpack.c.l.s8.bf16 %v453
    %v838 = vunpack.c.l.s8.bf16 %v454
    %v839 = vunpack.c.l.s8.bf16 %v455
    %v840 = vunpack.c.l.s8.bf16 %v456
    %v841 = vunpack.c.h.s8.bf16 %v449
    %v842 = vunpack.c.h.s8.bf16 %v450
    %v843 = vunpack.c.h.s8.bf16 %v451
    %v844 = vunpack.c.h.s8.bf16 %v452
    %v845 = vunpack.c.h.s8.bf16 %v453
    %v846 = vunpack.c.h.s8.bf16 %v454
    %v847 = vunpack.c.h.s8.bf16 %v455
    %v848 = vunpack.c.h.s8.bf16 %v456
    %v849 = vunpack.c.l.s8.bf16 %v457
    %v850 = vunpack.c.l.s8.bf16 %v458
    %v851 = vunpack.c.l.s8.bf16 %v459
    %v852 = vunpack.c.l.s8.bf16 %v460
    %v853 = vunpack.c.l.s8.bf16 %v461
    %v854 = vunpack.c.l.s8.bf16 %v462
    %v855 = vunpack.c.l.s8.bf16 %v463
    %v856 = vunpack.c.l.s8.bf16 %v464
    %v857 = vunpack.c.h.s8.bf16 %v457
    %v858 = vunpack.c.h.s8.bf16 %v458
    %v859 = vunpack.c.h.s8.bf16 %v459
    %v860 = vunpack.c.h.s8.bf16 %v460
    %v861 = vunpack.c.h.s8.bf16 %v461
    %v862 = vunpack.c.h.s8.bf16 %v462
    %v863 = vunpack.c.h.s8.bf16 %v463
    %v864 = vunpack.c.h.s8.bf16 %v464
    %v865 = vunpack.c.l.s8.bf16 %v465
    %v866 = vunpack.c.l.s8.bf16 %v466
    %v867 = vunpack.c.l.s8.bf16 %v467
    %v868 = vunpack.c.l.s8.bf16 %v468
    %v869 = vunpack.c.l.s8.bf16 %v469
    %v870 = vunpack.c.l.s8.bf16 %v470
    %v871 = vunpack.c.l.s8.bf16 %v471
    %v872 = vunpack.c.l.s8.bf16 %v472
    %v873 = vunpack.c.h.s8.bf16 %v465
    %v874 = vunpack.c.h.s8.bf16 %v466
    %v875 = vunpack.c.h.s8.bf16 %v467
    %v876 = vunpack.c.h.s8.bf16 %v468
    %v877 = vunpack.c.h.s8.bf16 %v469
    %v878 = vunpack.c.h.s8.bf16 %v470
    %v879 = vunpack.c.h.s8.bf16 %v471
    %v880 = vunpack.c.h.s8.bf16 %v472
    %v881 = vunpack.c.l.s8.bf16 %v473
    %v882 = vunpack.c.l.s8.bf16 %v474
    %v883 = vunpack.c.l.s8.bf16 %v475
    %v884 = vunpack.c.l.s8.bf16 %v476
    %v885 = vunpack.c.l.s8.bf16 %v477
    %v886 = vunpack.c.l.s8.bf16 %v478
    %v887 = vunpack.c.l.s8.bf16 %v479
    %v888 = vunpack.c.l.s8.bf16 %v480
    %v889 = vunpack.c.h.s8.bf16 %v473
    %v890 = vunpack.c.h.s8.bf16 %v474
    %v891 = vunpack.c.h.s8.bf16 %v475
    %v892 = vunpack.c.h.s8.bf16 %v476
    %v893 = vunpack.c.h.s8.bf16 %v477
    %v894 = vunpack.c.h.s8.bf16 %v478
    %v895 = vunpack.c.h.s8.bf16 %v479
    %v896 = vunpack.c.h.s8.bf16 %v480
    %v897 = vunpack.c.l.s8.bf16 %v481
    %v898 = vunpack.c.l.s8.bf16 %v482
    %v899 = vunpack.c.l.s8.bf16 %v483
    %v900 = vunpack.c.l.s8.bf16 %v484
    %v901 = vunpack.c.l.s8.bf16 %v485
    %v902 = vunpack.c.l.s8.bf16 %v486
    %v903 = vunpack.c.l.s8.bf16 %v487
    %v904 = vunpack.c.l.s8.bf16 %v488
    %v905 = vunpack.c.h.s8.bf16 %v481
    %v906 = vunpack.c.h.s8.bf16 %v482
    %v907 = vunpack.c.h.s8.bf16 %v483
    %v908 = vunpack.c.h.s8.bf16 %v484
    %v909 = vunpack.c.h.s8.bf16 %v485
    %v910 = vunpack.c.h.s8.bf16 %v486
    %v911 = vunpack.c.h.s8.bf16 %v487
    %v912 = vunpack.c.h.s8.bf16 %v488
    %v913 = vunpack.c.l.s8.bf16 %v489
    %v914 = vunpack.c.l.s8.bf16 %v490
    %v915 = vunpack.c.l.s8.bf16 %v491
    %v916 = vunpack.c.l.s8.bf16 %v492
    %v917 = vunpack.c.l.s8.bf16 %v493
    %v918 = vunpack.c.l.s8.bf16 %v494
    %v919 = vunpack.c.l.s8.bf16 %v495
    %v920 = vunpack.c.l.s8.bf16 %v496
    %v921 = vunpack.c.h.s8.bf16 %v489
    %v922 = vunpack.c.h.s8.bf16 %v490
    %v923 = vunpack.c.h.s8.bf16 %v491
    %v924 = vunpack.c.h.s8.bf16 %v492
    %v925 = vunpack.c.h.s8.bf16 %v493
    %v926 = vunpack.c.h.s8.bf16 %v494
    %v927 = vunpack.c.h.s8.bf16 %v495
    %v928 = vunpack.c.h.s8.bf16 %v496
    %v929 = vunpack.c.l.s8.bf16 %v497
    %v930 = vunpack.c.l.s8.bf16 %v498
    %v931 = vunpack.c.l.s8.bf16 %v499
    %v932 = vunpack.c.l.s8.bf16 %v500
    %v933 = vunpack.c.l.s8.bf16 %v501
    %v934 = vunpack.c.l.s8.bf16 %v502
    %v935 = vunpack.c.l.s8.bf16 %v503
    %v936 = vunpack.c.l.s8.bf16 %v504
    %v937 = vunpack.c.h.s8.bf16 %v497
    %v938 = vunpack.c.h.s8.bf16 %v498
    %v939 = vunpack.c.h.s8.bf16 %v499
    %v940 = vunpack.c.h.s8.bf16 %v500
    %v941 = vunpack.c.h.s8.bf16 %v501
    %v942 = vunpack.c.h.s8.bf16 %v502
    %v943 = vunpack.c.h.s8.bf16 %v503
    %v944 = vunpack.c.h.s8.bf16 %v504
    %v945 = vunpack.c.l.s8.bf16 %v505
    %v946 = vunpack.c.l.s8.bf16 %v506
    %v947 = vunpack.c.l.s8.bf16 %v507
    %v948 = vunpack.c.l.s8.bf16 %v508
    %v949 = vunpack.c.l.s8.bf16 %v509
    %v950 = vunpack.c.l.s8.bf16 %v510
    %v951 = vunpack.c.l.s8.bf16 %v511
    %v952 = vunpack.c.l.s8.bf16 %v512
    %v953 = vunpack.c.h.s8.bf16 %v505
    %v954 = vunpack.c.h.s8.bf16 %v506
    %v955 = vunpack.c.h.s8.bf16 %v507
    %v956 = vunpack.c.h.s8.bf16 %v508
    %v957 = vunpack.c.h.s8.bf16 %v509
    %v958 = vunpack.c.h.s8.bf16 %v510
    %v959 = vunpack.c.h.s8.bf16 %v511
    %v960 = vunpack.c.h.s8.bf16 %v512
    %v961 = vunpack.c.l.s8.bf16 %v513
    %v962 = vunpack.c.l.s8.bf16 %v514
    %v963 = vunpack.c.l.s8.bf16 %v515
    %v964 = vunpack.c.l.s8.bf16 %v516
    %v965 = vunpack.c.l.s8.bf16 %v517
    %v966 = vunpack.c.l.s8.bf16 %v518
    %v967 = vunpack.c.l.s8.bf16 %v519
    %v968 = vunpack.c.l.s8.bf16 %v520
    %v969 = vunpack.c.h.s8.bf16 %v513
    %v970 = vunpack.c.h.s8.bf16 %v514
    %v971 = vunpack.c.h.s8.bf16 %v515
    %v972 = vunpack.c.h.s8.bf16 %v516
    %v973 = vunpack.c.h.s8.bf16 %v517
    %v974 = vunpack.c.h.s8.bf16 %v518
    %v975 = vunpack.c.h.s8.bf16 %v519
    %v976 = vunpack.c.h.s8.bf16 %v520
    %v977 = vunpack.c.l.s8.bf16 %v521
    %v978 = vunpack.c.l.s8.bf16 %v522
    %v979 = vunpack.c.l.s8.bf16 %v523
    %v980 = vunpack.c.l.s8.bf16 %v524
    %v981 = vunpack.c.l.s8.bf16 %v525
    %v982 = vunpack.c.l.s8.bf16 %v526
    %v983 = vunpack.c.l.s8.bf16 %v527
    %v984 = vunpack.c.l.s8.bf16 %v528
    %v985 = vunpack.c.h.s8.bf16 %v521
    %v986 = vunpack.c.h.s8.bf16 %v522
    %v987 = vunpack.c.h.s8.bf16 %v523
    %v988 = vunpack.c.h.s8.bf16 %v524
    %v989 = vunpack.c.h.s8.bf16 %v525
    %v990 = vunpack.c.h.s8.bf16 %v526
    %v991 = vunpack.c.h.s8.bf16 %v527
    %v992 = vunpack.c.h.s8.bf16 %v528
    %v993 = vunpack.c.l.s8.bf16 %v529
    %v994 = vunpack.c.l.s8.bf16 %v530
    %v995 = vunpack.c.l.s8.bf16 %v531
    %v996 = vunpack.c.l.s8.bf16 %v532
    %v997 = vunpack.c.l.s8.bf16 %v533
    %v998 = vunpack.c.l.s8.bf16 %v534
    %v999 = vunpack.c.l.s8.bf16 %v535
    %v1000 = vunpack.c.l.s8.bf16 %v536
    %v1001 = vunpack.c.h.s8.bf16 %v529
    %v1002 = vunpack.c.h.s8.bf16 %v530
    %v1003 = vunpack.c.h.s8.bf16 %v531
    %v1004 = vunpack.c.h.s8.bf16 %v532
    %v1005 = vunpack.c.h.s8.bf16 %v533
    %v1006 = vunpack.c.h.s8.bf16 %v534
    %v1007 = vunpack.c.h.s8.bf16 %v535
    %v1008 = vunpack.c.h.s8.bf16 %v536
    %v1009 = vunpack.c.l.s8.bf16 %v537
    %v1010 = vunpack.c.l.s8.bf16 %v538
    %v1011 = vunpack.c.l.s8.bf16 %v539
    %v1012 = vunpack.c.l.s8.bf16 %v540
    %v1013 = vunpack.c.l.s8.bf16 %v541
    %v1014 = vunpack.c.l.s8.bf16 %v542
    %v1015 = vunpack.c.l.s8.bf16 %v543
    %v1016 = vunpack.c.l.s8.bf16 %v544
    %v1017 = vunpack.c.h.s8.bf16 %v537
    %v1018 = vunpack.c.h.s8.bf16 %v538
    %v1019 = vunpack.c.h.s8.bf16 %v539
    %v1020 = vunpack.c.h.s8.bf16 %v540
    %v1021 = vunpack.c.h.s8.bf16 %v541
    %v1022 = vunpack.c.h.s8.bf16 %v542
    %v1023 = vunpack.c.h.s8.bf16 %v543
    %v1024 = vunpack.c.h.s8.bf16 %v544
    %v1025 = vunpack.c.l.s8.bf16 %v545
    %v1026 = vunpack.c.l.s8.bf16 %v546
    %v1027 = vunpack.c.l.s8.bf16 %v547
    %v1028 = vunpack.c.l.s8.bf16 %v548
    %v1029 = vunpack.c.l.s8.bf16 %v549
    %v1030 = vunpack.c.l.s8.bf16 %v550
    %v1031 = vunpack.c.l.s8.bf16 %v551
    %v1032 = vunpack.c.l.s8.bf16 %v552
    %v1033 = vunpack.c.h.s8.bf16 %v545
    %v1034 = vunpack.c.h.s8.bf16 %v546
    %v1035 = vunpack.c.h.s8.bf16 %v547
    %v1036 = vunpack.c.h.s8.bf16 %v548
    %v1037 = vunpack.c.h.s8.bf16 %v549
    %v1038 = vunpack.c.h.s8.bf16 %v550
    %v1039 = vunpack.c.h.s8.bf16 %v551
    %v1040 = vunpack.c.h.s8.bf16 %v552
    %v1041 = vunpack.c.l.s8.bf16 %v553
    %v1042 = vunpack.c.l.s8.bf16 %v554
    %v1043 = vunpack.c.l.s8.bf16 %v555
    %v1044 = vunpack.c.l.s8.bf16 %v556
    %v1045 = vunpack.c.l.s8.bf16 %v557
    %v1046 = vunpack.c.l.s8.bf16 %v558
    %v1047 = vunpack.c.l.s8.bf16 %v559
    %v1048 = vunpack.c.l.s8.bf16 %v560
    %v1049 = vunpack.c.h.s8.bf16 %v553
    %v1050 = vunpack.c.h.s8.bf16 %v554
    %v1051 = vunpack.c.h.s8.bf16 %v555
    %v1052 = vunpack.c.h.s8.bf16 %v556
    %v1053 = vunpack.c.h.s8.bf16 %v557
    %v1054 = vunpack.c.h.s8.bf16 %v558
    %v1055 = vunpack.c.h.s8.bf16 %v559
    %v1056 = vunpack.c.h.s8.bf16 %v560
    %v1057 = vunpack.c.l.s8.bf16 %v561
    %v1058 = vunpack.c.l.s8.bf16 %v562
    %v1059 = vunpack.c.l.s8.bf16 %v563
    %v1060 = vunpack.c.l.s8.bf16 %v564
    %v1061 = vunpack.c.l.s8.bf16 %v565
    %v1062 = vunpack.c.l.s8.bf16 %v566
    %v1063 = vunpack.c.l.s8.bf16 %v567
    %v1064 = vunpack.c.l.s8.bf16 %v568
    %v1065 = vunpack.c.h.s8.bf16 %v561
    %v1066 = vunpack.c.h.s8.bf16 %v562
    %v1067 = vunpack.c.h.s8.bf16 %v563
    %v1068 = vunpack.c.h.s8.bf16 %v564
    %v1069 = vunpack.c.h.s8.bf16 %v565
    %v1070 = vunpack.c.h.s8.bf16 %v566
    %v1071 = vunpack.c.h.s8.bf16 %v567
    %v1072 = vunpack.c.h.s8.bf16 %v568
    %v1073 = vunpack.c.l.s8.bf16 %v569
    %v1074 = vunpack.c.l.s8.bf16 %v570
    %v1075 = vunpack.c.l.s8.bf16 %v571
    %v1076 = vunpack.c.l.s8.bf16 %v572
    %v1077 = vunpack.c.l.s8.bf16 %v573
    %v1078 = vunpack.c.l.s8.bf16 %v574
    %v1079 = vunpack.c.l.s8.bf16 %v575
    %v1080 = vunpack.c.l.s8.bf16 %v576
    %v1081 = vunpack.c.h.s8.bf16 %v569
    %v1082 = vunpack.c.h.s8.bf16 %v570
    %v1083 = vunpack.c.h.s8.bf16 %v571
    %v1084 = vunpack.c.h.s8.bf16 %v572
    %v1085 = vunpack.c.h.s8.bf16 %v573
    %v1086 = vunpack.c.h.s8.bf16 %v574
    %v1087 = vunpack.c.h.s8.bf16 %v575
    %v1088 = vunpack.c.h.s8.bf16 %v576
    %v1089 = vpack.c.bf16 %v313, %v313
    %v1090 = vpack.c.bf16 %v314, %v314
    %v1091 = vpack.c.bf16 %v315, %v315
    %v1092 = vpack.c.bf16 %v316, %v316
    %v1093 = vpack.c.bf16 %v317, %v317
    %v1094 = vpack.c.bf16 %v318, %v318
    %v1095 = vpack.c.bf16 %v319, %v319
    %v1096 = vpack.c.bf16 %v320, %v320
    %1097 = vmatprep.subr.bf16.mxu0 %v634
    %1098 = vmatpush1.bf16.msra.mxu0 %v633
    %1099 = vmatprep.subr.bf16.mxu0 %v626
    %1100 = vmatpush1.bf16.msra.mxu0 %v625
    %1101 = vmatprep.subr.bf16.mxu0 %v618
    %1102 = vmatpush1.bf16.msra.mxu0 %v617
    %1103 = vmatprep.subr.bf16.mxu0 %v610
    %1104 = vmatpush1.bf16.msra.mxu0 %v609
    %1105 = vmatprep.subr.bf16.mxu0 %v602
    %1106 = vmatpush1.bf16.msra.mxu0 %v601
    %1107 = vmatprep.subr.bf16.mxu0 %v594
    %1108 = vmatpush1.bf16.msra.mxu0 %v593
    %1109 = vmatprep.subr.bf16.mxu0 %v586
    %1110 = vmatpush1.bf16.msra.mxu0 %v585
    %1111 = vmatprep.subr.bf16.mxu0 %v578
    %1112 = vmatpush1.bf16.msra.mxu0 %v577
    %1113 = vmatprep.subr.bf16.mxu0 %v698
    %1114 = vmatpush2.bf16.msra.mxu0 %v697
    %1115 = vmatprep.subr.bf16.mxu0 %v690
    %1116 = vmatpush2.bf16.msra.mxu0 %v689
    %1117 = vmatprep.subr.bf16.mxu0 %v682
    %1118 = vmatpush2.bf16.msra.mxu0 %v681
    %1119 = vmatprep.subr.bf16.mxu0 %v674
    %1120 = vmatpush2.bf16.msra.mxu0 %v673
    %1121 = vmatprep.subr.bf16.mxu0 %v666
    %1122 = vmatpush2.bf16.msra.mxu0 %v665
    %1123 = vmatprep.subr.bf16.mxu0 %v658
    %1124 = vmatpush2.bf16.msra.mxu0 %v657
    %1125 = vmatprep.subr.bf16.mxu0 %v650
    %1126 = vmatpush2.bf16.msra.mxu0 %v649
    %1127 = vmatprep.subr.bf16.mxu0 %v642
    %1128 = vmatpush2.bf16.msra.mxu0 %v641
    %1129 = vmatprep.mubr.bf16.mxu0 %v1090
    %1130 = vmatmul.mubr.bf16.gmra.mxu0 %v1089
    %v1131 = vpop.f32.mrf.mxu0
    %v1132 = vadd.f32 0.0, %v1131
    %v1133 = vpop.f32.mrf.mxu0
    %v1134 = vadd.f32 0.0, %v1133
    %v1135 = vpop.f32.mrf.mxu0
    %v1136 = vpop.f32.mrf.mxu0
    %1137 = vdwg.mxu0
    %1138 = vmatprep.subr.bf16.mxu0 %v762
    %1139 = vmatpush1.bf16.msra.mxu0 %v761
    %1140 = vmatprep.subr.bf16.mxu0 %v754
    %1141 = vmatpush1.bf16.msra.mxu0 %v753
    %1142 = vmatprep.subr.bf16.mxu0 %v746
    %1143 = vmatpush1.bf16.msra.mxu0 %v745
    %1144 = vmatprep.subr.bf16.mxu0 %v738
    %1145 = vmatpush1.bf16.msra.mxu0 %v737
    %1146 = vmatprep.subr.bf16.mxu0 %v730
    %1147 = vmatpush1.bf16.msra.mxu0 %v729
    %1148 = vmatprep.subr.bf16.mxu0 %v722
    %1149 = vmatpush1.bf16.msra.mxu0 %v721
    %1150 = vmatprep.subr.bf16.mxu0 %v714
    %1151 = vmatpush1.bf16.msra.mxu0 %v713
    %1152 = vmatprep.subr.bf16.mxu0 %v706
    %1153 = vmatpush1.bf16.msra.mxu0 %v705
    %1154 = vmatprep.subr.bf16.mxu0 %v826
    %1155 = vmatpush2.bf16.msra.mxu0 %v825
    %1156 = vmatprep.subr.bf16.mxu0 %v818
    %1157 = vmatpush2.bf16.msra.mxu0 %v817
    %1158 = vmatprep.subr.bf16.mxu0 %v810
    %1159 = vmatpush2.bf16.msra.mxu0 %v809
    %1160 = vmatprep.subr.bf16.mxu0 %v802
    %1161 = vmatpush2.bf16.msra.mxu0 %v801
    %1162 = vmatprep.subr.bf16.mxu0 %v794
    %1163 = vmatpush2.bf16.msra.mxu0 %v793
    %1164 = vmatprep.subr.bf16.mxu0 %v786
    %1165 = vmatpush2.bf16.msra.mxu0 %v785
    %1166 = vmatprep.subr.bf16.mxu0 %v778
    %1167 = vmatpush2.bf16.msra.mxu0 %v777
    %1168 = vmatprep.subr.bf16.mxu0 %v770
    %1169 = vmatpush2.bf16.msra.mxu0 %v769
    %1170 = vmatprep.mubr.bf16.mxu0 %v1092
    %1171 = vmatmul.mubr.bf16.gmra.mxu0 %v1091
    %v1172 = vpop.f32.mrf.mxu0
    %v1173 = vadd.f32 %v1132, %v1172
    %v1174 = vpop.f32.mrf.mxu0
    %v1175 = vadd.f32 %v1134, %v1174
    %v1176 = vpop.f32.mrf.mxu0
    %v1177 = vpop.f32.mrf.mxu0
    %1178 = vdwg.mxu0
    %1179 = vmatprep.subr.bf16.mxu0 %v890
    %1180 = vmatpush1.bf16.msra.mxu0 %v889
    %1181 = vmatprep.subr.bf16.mxu0 %v882
    %1182 = vmatpush1.bf16.msra.mxu0 %v881
    %1183 = vmatprep.subr.bf16.mxu0 %v874
    %1184 = vmatpush1.bf16.msra.mxu0 %v873
    %1185 = vmatprep.subr.bf16.mxu0 %v866
    %1186 = vmatpush1.bf16.msra.mxu0 %v865
    %1187 = vmatprep.subr.bf16.mxu0 %v858
    %1188 = vmatpush1.bf16.msra.mxu0 %v857
    %1189 = vmatprep.subr.bf16.mxu0 %v850
    %1190 = vmatpush1.bf16.msra.mxu0 %v849
    %1191 = vmatprep.subr.bf16.mxu0 %v842
    %1192 = vmatpush1.bf16.msra.mxu0 %v841
    %1193 = vmatprep.subr.bf16.mxu0 %v834
    %1194 = vmatpush1.bf16.msra.mxu0 %v833
    %1195 = vmatprep.subr.bf16.mxu0 %v954
    %1196 = vmatpush2.bf16.msra.mxu0 %v953
    %1197 = vmatprep.subr.bf16.mxu0 %v946
    %1198 = vmatpush2.bf16.msra.mxu0 %v945
    %1199 = vmatprep.subr.bf16.mxu0 %v938
    %1200 = vmatpush2.bf16.msra.mxu0 %v937
    %1201 = vmatprep.subr.bf16.mxu0 %v930
    %1202 = vmatpush2.bf16.msra.mxu0 %v929
    %1203 = vmatprep.subr.bf16.mxu0 %v922
    %1204 = vmatpush2.bf16.msra.mxu0 %v921
    %1205 = vmatprep.subr.bf16.mxu0 %v914
    %1206 = vmatpush2.bf16.msra.mxu0 %v913
    %1207 = vmatprep.subr.bf16.mxu0 %v906
    %1208 = vmatpush2.bf16.msra.mxu0 %v905
    %1209 = vmatprep.subr.bf16.mxu0 %v898
    %1210 = vmatpush2.bf16.msra.mxu0 %v897
    %1211 = vmatprep.mubr.bf16.mxu0 %v1094
    %1212 = vmatmul.mubr.bf16.gmra.mxu0 %v1093
    %v1213 = vpop.f32.mrf.mxu0
    %v1214 = vadd.f32 %v1173, %v1213
    %v1215 = vpop.f32.mrf.mxu0
    %v1216 = vadd.f32 %v1175, %v1215
    %v1217 = vpop.f32.mrf.mxu0
    %v1218 = vpop.f32.mrf.mxu0
    %1219 = vdwg.mxu0
    %1220 = vmatprep.subr.bf16.mxu0 %v1018
    %1221 = vmatpush1.bf16.msra.mxu0 %v1017
    %1222 = vmatprep.subr.bf16.mxu0 %v1010
    %1223 = vmatpush1.bf16.msra.mxu0 %v1009
    %1224 = vmatprep.subr.bf16.mxu0 %v1002
    %1225 = vmatpush1.bf16.msra.mxu0 %v1001
    %1226 = vmatprep.subr.bf16.mxu0 %v994
    %1227 = vmatpush1.bf16.msra.mxu0 %v993
    %1228 = vmatprep.subr.bf16.mxu0 %v986
    %1229 = vmatpush1.bf16.msra.mxu0 %v985
    %1230 = vmatprep.subr.bf16.mxu0 %v978
    %1231 = vmatpush1.bf16.msra.mxu0 %v977
    %1232 = vmatprep.subr.bf16.mxu0 %v970
    %1233 = vmatpush1.bf16.msra.mxu0 %v969
    %1234 = vmatprep.subr.bf16.mxu0 %v962
    %1235 = vmatpush1.bf16.msra.mxu0 %v961
    %1236 = vmatprep.subr.bf16.mxu0 %v1082
    %1237 = vmatpush2.bf16.msra.mxu0 %v1081
    %1238 = vmatprep.subr.bf16.mxu0 %v1074
    %1239 = vmatpush2.bf16.msra.mxu0 %v1073
    %1240 = vmatprep.subr.bf16.mxu0 %v1066
    %1241 = vmatpush2.bf16.msra.mxu0 %v1065
    %1242 = vmatprep.subr.bf16.mxu0 %v1058
    %1243 = vmatpush2.bf16.msra.mxu0 %v1057
    %1244 = vmatprep.subr.bf16.mxu0 %v1050
    %1245 = vmatpush2.bf16.msra.mxu0 %v1049
    %1246 = vmatprep.subr.bf16.mxu0 %v1042
    %1247 = vmatpush2.bf16.msra.mxu0 %v1041
    %1248 = vmatprep.subr.bf16.mxu0 %v1034
    %1249 = vmatpush2.bf16.msra.mxu0 %v1033
    %1250 = vmatprep.subr.bf16.mxu0 %v1026
    %1251 = vmatpush2.bf16.msra.mxu0 %v1025
    %1252 = vmatprep.mubr.bf16.mxu0 %v1096
    %1253 = vmatmul.mubr.bf16.gmra.mxu0 %v1095
    %v1254 = vpop.f32.mrf.mxu0
    %v1255 = vadd.f32 %v1214, %v1254
    %v1256 = vpop.f32.mrf.mxu0
    %v1257 = vadd.f32 %v1216, %v1256
    %v1258 = vpop.f32.mrf.mxu0
    %v1259 = vpop.f32.mrf.mxu0
    %1260 = vdwg.mxu0
    %1261 = vmatprep.subr.bf16.mxu0 %v636
    %1262 = vmatpush1.bf16.msra.mxu0 %v635
    %1263 = vmatprep.subr.bf16.mxu0 %v628
    %1264 = vmatpush1.bf16.msra.mxu0 %v627
    %1265 = vmatprep.subr.bf16.mxu0 %v620
    %1266 = vmatpush1.bf16.msra.mxu0 %v619
    %1267 = vmatprep.subr.bf16.mxu0 %v612
    %1268 = vmatpush1.bf16.msra.mxu0 %v611
    %1269 = vmatprep.subr.bf16.mxu0 %v604
    %1270 = vmatpush1.bf16.msra.mxu0 %v603
    %1271 = vmatprep.subr.bf16.mxu0 %v596
    %1272 = vmatpush1.bf16.msra.mxu0 %v595
    %1273 = vmatprep.subr.bf16.mxu0 %v588
    %1274 = vmatpush1.bf16.msra.mxu0 %v587
    %1275 = vmatprep.subr.bf16.mxu0 %v580
    %1276 = vmatpush1.bf16.msra.mxu0 %v579
    %1277 = vmatprep.subr.bf16.mxu0 %v700
    %1278 = vmatpush2.bf16.msra.mxu0 %v699
    %1279 = vmatprep.subr.bf16.mxu0 %v692
    %1280 = vmatpush2.bf16.msra.mxu0 %v691
    %1281 = vmatprep.subr.bf16.mxu0 %v684
    %1282 = vmatpush2.bf16.msra.mxu0 %v683
    %1283 = vmatprep.subr.bf16.mxu0 %v676
    %1284 = vmatpush2.bf16.msra.mxu0 %v675
    %1285 = vmatprep.subr.bf16.mxu0 %v668
    %1286 = vmatpush2.bf16.msra.mxu0 %v667
    %1287 = vmatprep.subr.bf16.mxu0 %v660
    %1288 = vmatpush2.bf16.msra.mxu0 %v659
    %1289 = vmatprep.subr.bf16.mxu0 %v652
    %1290 = vmatpush2.bf16.msra.mxu0 %v651
    %1291 = vmatprep.subr.bf16.mxu0 %v644
    %1292 = vmatpush2.bf16.msra.mxu0 %v643
    %1293 = vmatprep.mubr.bf16.mxu0 %v1090
    %1294 = vmatmul.mubr.bf16.gmra.mxu0 %v1089
    %v1295 = vpop.f32.mrf.mxu0
    %v1296 = vadd.f32 0.0, %v1295
    %v1297 = vpop.f32.mrf.mxu0
    %v1298 = vadd.f32 0.0, %v1297
    %v1299 = vpop.f32.mrf.mxu0
    %v1300 = vpop.f32.mrf.mxu0
    %1301 = vdwg.mxu0
    %1302 = vmatprep.subr.bf16.mxu0 %v764
    %1303 = vmatpush1.bf16.msra.mxu0 %v763
    %1304 = vmatprep.subr.bf16.mxu0 %v756
    %1305 = vmatpush1.bf16.msra.mxu0 %v755
    %1306 = vmatprep.subr.bf16.mxu0 %v748
    %1307 = vmatpush1.bf16.msra.mxu0 %v747
    %1308 = vmatprep.subr.bf16.mxu0 %v740
    %1309 = vmatpush1.bf16.msra.mxu0 %v739
    %1310 = vmatprep.subr.bf16.mxu0 %v732
    %1311 = vmatpush1.bf16.msra.mxu0 %v731
    %1312 = vmatprep.subr.bf16.mxu0 %v724
    %1313 = vmatpush1.bf16.msra.mxu0 %v723
    %1314 = vmatprep.subr.bf16.mxu0 %v716
    %1315 = vmatpush1.bf16.msra.mxu0 %v715
    %1316 = vmatprep.subr.bf16.mxu0 %v708
    %1317 = vmatpush1.bf16.msra.mxu0 %v707
    %1318 = vmatprep.subr.bf16.mxu0 %v828
    %1319 = vmatpush2.bf16.msra.mxu0 %v827
    %1320 = vmatprep.subr.bf16.mxu0 %v820
    %1321 = vmatpush2.bf16.msra.mxu0 %v819
    %1322 = vmatprep.subr.bf16.mxu0 %v812
    %1323 = vmatpush2.bf16.msra.mxu0 %v811
    %1324 = vmatprep.subr.bf16.mxu0 %v804
    %1325 = vmatpush2.bf16.msra.mxu0 %v803
    %1326 = vmatprep.subr.bf16.mxu0 %v796
    %1327 = vmatpush2.bf16.msra.mxu0 %v795
    %1328 = vmatprep.subr.bf16.mxu0 %v788
    %1329 = vmatpush2.bf16.msra.mxu0 %v787
    %1330 = vmatprep.subr.bf16.mxu0 %v780
    %1331 = vmatpush2.bf16.msra.mxu0 %v779
    %1332 = vmatprep.subr.bf16.mxu0 %v772
    %1333 = vmatpush2.bf16.msra.mxu0 %v771
    %1334 = vmatprep.mubr.bf16.mxu0 %v1092
    %1335 = vmatmul.mubr.bf16.gmra.mxu0 %v1091
    %v1336 = vpop.f32.mrf.mxu0
    %v1337 = vadd.f32 %v1296, %v1336
    %v1338 = vpop.f32.mrf.mxu0
    %v1339 = vadd.f32 %v1298, %v1338
    %v1340 = vpop.f32.mrf.mxu0
    %v1341 = vpop.f32.mrf.mxu0
    %1342 = vdwg.mxu0
    %1343 = vmatprep.subr.bf16.mxu0 %v892
    %1344 = vmatpush1.bf16.msra.mxu0 %v891
    %1345 = vmatprep.subr.bf16.mxu0 %v884
    %1346 = vmatpush1.bf16.msra.mxu0 %v883
    %1347 = vmatprep.subr.bf16.mxu0 %v876
    %1348 = vmatpush1.bf16.msra.mxu0 %v875
    %1349 = vmatprep.subr.bf16.mxu0 %v868
    %1350 = vmatpush1.bf16.msra.mxu0 %v867
    %1351 = vmatprep.subr.bf16.mxu0 %v860
    %1352 = vmatpush1.bf16.msra.mxu0 %v859
    %1353 = vmatprep.subr.bf16.mxu0 %v852
    %1354 = vmatpush1.bf16.msra.mxu0 %v851
    %1355 = vmatprep.subr.bf16.mxu0 %v844
    %1356 = vmatpush1.bf16.msra.mxu0 %v843
    %1357 = vmatprep.subr.bf16.mxu0 %v836
    %1358 = vmatpush1.bf16.msra.mxu0 %v835
    %1359 = vmatprep.subr.bf16.mxu0 %v956
    %1360 = vmatpush2.bf16.msra.mxu0 %v955
    %1361 = vmatprep.subr.bf16.mxu0 %v948
    %1362 = vmatpush2.bf16.msra.mxu0 %v947
    %1363 = vmatprep.subr.bf16.mxu0 %v940
    %1364 = vmatpush2.bf16.msra.mxu0 %v939
    %1365 = vmatprep.subr.bf16.mxu0 %v932
    %1366 = vmatpush2.bf16.msra.mxu0 %v931
    %1367 = vmatprep.subr.bf16.mxu0 %v924
    %1368 = vmatpush2.bf16.msra.mxu0 %v923
    %1369 = vmatprep.subr.bf16.mxu0 %v916
    %1370 = vmatpush2.bf16.msra.mxu0 %v915
    %1371 = vmatprep.subr.bf16.mxu0 %v908
    %1372 = vmatpush2.bf16.msra.mxu0 %v907
    %1373 = vmatprep.subr.bf16.mxu0 %v900
    %1374 = vmatpush2.bf16.msra.mxu0 %v899
    %1375 = vmatprep.mubr.bf16.mxu0 %v1094
    %1376 = vmatmul.mubr.bf16.gmra.mxu0 %v1093
    %v1377 = vpop.f32.mrf.mxu0
    %v1378 = vadd.f32 %v1337, %v1377
    %v1379 = vpop.f32.mrf.mxu0
    %v1380 = vadd.f32 %v1339, %v1379
    %v1381 = vpop.f32.mrf.mxu0
    %v1382 = vpop.f32.mrf.mxu0
    %1383 = vdwg.mxu0
    %1384 = vmatprep.subr.bf16.mxu0 %v1020
    %1385 = vmatpush1.bf16.msra.mxu0 %v1019
    %1386 = vmatprep.subr.bf16.mxu0 %v1012
    %1387 = vmatpush1.bf16.msra.mxu0 %v1011
    %1388 = vmatprep.subr.bf16.mxu0 %v1004
    %1389 = vmatpush1.bf16.msra.mxu0 %v1003
    %1390 = vmatprep.subr.bf16.mxu0 %v996
    %1391 = vmatpush1.bf16.msra.mxu0 %v995
    %1392 = vmatprep.subr.bf16.mxu0 %v988
    %1393 = vmatpush1.bf16.msra.mxu0 %v987
    %1394 = vmatprep.subr.bf16.mxu0 %v980
    %1395 = vmatpush1.bf16.msra.mxu0 %v979
    %1396 = vmatprep.subr.bf16.mxu0 %v972
    %1397 = vmatpush1.bf16.msra.mxu0 %v971
    %1398 = vmatprep.subr.bf16.mxu0 %v964
    %1399 = vmatpush1.bf16.msra.mxu0 %v963
    %1400 = vmatprep.subr.bf16.mxu0 %v1084
    %1401 = vmatpush2.bf16.msra.mxu0 %v1083
    %1402 = vmatprep.subr.bf16.mxu0 %v1076
    %1403 = vmatpush2.bf16.msra.mxu0 %v1075
    %1404 = vmatprep.subr.bf16.mxu0 %v1068
    %1405 = vmatpush2.bf16.msra.mxu0 %v1067
    %1406 = vmatprep.subr.bf16.mxu0 %v1060
    %1407 = vmatpush2.bf16.msra.mxu0 %v1059
    %1408 = vmatprep.subr.bf16.mxu0 %v1052
    %1409 = vmatpush2.bf16.msra.mxu0 %v1051
    %1410 = vmatprep.subr.bf16.mxu0 %v1044
    %1411 = vmatpush2.bf16.msra.mxu0 %v1043
    %1412 = vmatprep.subr.bf16.mxu0 %v1036
    %1413 = vmatpush2.bf16.msra.mxu0 %v1035
    %1414 = vmatprep.subr.bf16.mxu0 %v1028
    %1415 = vmatpush2.bf16.msra.mxu0 %v1027
    %1416 = vmatprep.mubr.bf16.mxu0 %v1096
    %1417 = vmatmul.mubr.bf16.gmra.mxu0 %v1095
    %v1418 = vpop.f32.mrf.mxu0
    %v1419 = vadd.f32 %v1378, %v1418
    %v1420 = vpop.f32.mrf.mxu0
    %v1421 = vadd.f32 %v1380, %v1420
    %v1422 = vpop.f32.mrf.mxu0
    %v1423 = vpop.f32.mrf.mxu0
    %1424 = vdwg.mxu0
    %1425 = vmatprep.subr.bf16.mxu0 %v638
    %1426 = vmatpush1.bf16.msra.mxu0 %v637
    %1427 = vmatprep.subr.bf16.mxu0 %v630
    %1428 = vmatpush1.bf16.msra.mxu0 %v629
    %1429 = vmatprep.subr.bf16.mxu0 %v622
    %1430 = vmatpush1.bf16.msra.mxu0 %v621
    %1431 = vmatprep.subr.bf16.mxu0 %v614
    %1432 = vmatpush1.bf16.msra.mxu0 %v613
    %1433 = vmatprep.subr.bf16.mxu0 %v606
    %1434 = vmatpush1.bf16.msra.mxu0 %v605
    %1435 = vmatprep.subr.bf16.mxu0 %v598
    %1436 = vmatpush1.bf16.msra.mxu0 %v597
    %1437 = vmatprep.subr.bf16.mxu0 %v590
    %1438 = vmatpush1.bf16.msra.mxu0 %v589
    %1439 = vmatprep.subr.bf16.mxu0 %v582
    %1440 = vmatpush1.bf16.msra.mxu0 %v581
    %1441 = vmatprep.subr.bf16.mxu0 %v702
    %1442 = vmatpush2.bf16.msra.mxu0 %v701
    %1443 = vmatprep.subr.bf16.mxu0 %v694
    %1444 = vmatpush2.bf16.msra.mxu0 %v693
    %1445 = vmatprep.subr.bf16.mxu0 %v686
    %1446 = vmatpush2.bf16.msra.mxu0 %v685
    %1447 = vmatprep.subr.bf16.mxu0 %v678
    %1448 = vmatpush2.bf16.msra.mxu0 %v677
    %1449 = vmatprep.subr.bf16.mxu0 %v670
    %1450 = vmatpush2.bf16.msra.mxu0 %v669
    %1451 = vmatprep.subr.bf16.mxu0 %v662
    %1452 = vmatpush2.bf16.msra.mxu0 %v661
    %1453 = vmatprep.subr.bf16.mxu0 %v654
    %1454 = vmatpush2.bf16.msra.mxu0 %v653
    %1455 = vmatprep.subr.bf16.mxu0 %v646
    %1456 = vmatpush2.bf16.msra.mxu0 %v645
    %1457 = vmatprep.mubr.bf16.mxu0 %v1090
    %1458 = vmatmul.mubr.bf16.gmra.mxu0 %v1089
    %v1459 = vpop.f32.mrf.mxu0
    %v1460 = vadd.f32 0.0, %v1459
    %v1461 = vpop.f32.mrf.mxu0
    %v1462 = vadd.f32 0.0, %v1461
    %v1463 = vpop.f32.mrf.mxu0
    %v1464 = vpop.f32.mrf.mxu0
    %1465 = vdwg.mxu0
    %1466 = vmatprep.subr.bf16.mxu0 %v766
    %1467 = vmatpush1.bf16.msra.mxu0 %v765
    %1468 = vmatprep.subr.bf16.mxu0 %v758
    %1469 = vmatpush1.bf16.msra.mxu0 %v757
    %1470 = vmatprep.subr.bf16.mxu0 %v750
    %1471 = vmatpush1.bf16.msra.mxu0 %v749
    %1472 = vmatprep.subr.bf16.mxu0 %v742
    %1473 = vmatpush1.bf16.msra.mxu0 %v741
    %1474 = vmatprep.subr.bf16.mxu0 %v734
    %1475 = vmatpush1.bf16.msra.mxu0 %v733
    %1476 = vmatprep.subr.bf16.mxu0 %v726
    %1477 = vmatpush1.bf16.msra.mxu0 %v725
    %1478 = vmatprep.subr.bf16.mxu0 %v718
    %1479 = vmatpush1.bf16.msra.mxu0 %v717
    %1480 = vmatprep.subr.bf16.mxu0 %v710
    %1481 = vmatpush1.bf16.msra.mxu0 %v709
    %1482 = vmatprep.subr.bf16.mxu0 %v830
    %1483 = vmatpush2.bf16.msra.mxu0 %v829
    %1484 = vmatprep.subr.bf16.mxu0 %v822
    %1485 = vmatpush2.bf16.msra.mxu0 %v821
    %1486 = vmatprep.subr.bf16.mxu0 %v814
    %1487 = vmatpush2.bf16.msra.mxu0 %v813
    %1488 = vmatprep.subr.bf16.mxu0 %v806
    %1489 = vmatpush2.bf16.msra.mxu0 %v805
    %1490 = vmatprep.subr.bf16.mxu0 %v798
    %1491 = vmatpush2.bf16.msra.mxu0 %v797
    %1492 = vmatprep.subr.bf16.mxu0 %v790
    %1493 = vmatpush2.bf16.msra.mxu0 %v789
    %1494 = vmatprep.subr.bf16.mxu0 %v782
    %1495 = vmatpush2.bf16.msra.mxu0 %v781
    %1496 = vmatprep.subr.bf16.mxu0 %v774
    %1497 = vmatpush2.bf16.msra.mxu0 %v773
    %1498 = vmatprep.mubr.bf16.mxu0 %v1092
    %1499 = vmatmul.mubr.bf16.gmra.mxu0 %v1091
    %v1500 = vpop.f32.mrf.mxu0
    %v1501 = vadd.f32 %v1460, %v1500
    %v1502 = vpop.f32.mrf.mxu0
    %v1503 = vadd.f32 %v1462, %v1502
    %v1504 = vpop.f32.mrf.mxu0
    %v1505 = vpop.f32.mrf.mxu0
    %1506 = vdwg.mxu0
    %1507 = vmatprep.subr.bf16.mxu0 %v894
    %1508 = vmatpush1.bf16.msra.mxu0 %v893
    %1509 = vmatprep.subr.bf16.mxu0 %v886
    %1510 = vmatpush1.bf16.msra.mxu0 %v885
    %1511 = vmatprep.subr.bf16.mxu0 %v878
    %1512 = vmatpush1.bf16.msra.mxu0 %v877
    %1513 = vmatprep.subr.bf16.mxu0 %v870
    %1514 = vmatpush1.bf16.msra.mxu0 %v869
    %1515 = vmatprep.subr.bf16.mxu0 %v862
    %1516 = vmatpush1.bf16.msra.mxu0 %v861
    %1517 = vmatprep.subr.bf16.mxu0 %v854
    %1518 = vmatpush1.bf16.msra.mxu0 %v853
    %1519 = vmatprep.subr.bf16.mxu0 %v846
    %1520 = vmatpush1.bf16.msra.mxu0 %v845
    %1521 = vmatprep.subr.bf16.mxu0 %v838
    %1522 = vmatpush1.bf16.msra.mxu0 %v837
    %1523 = vmatprep.subr.bf16.mxu0 %v958
    %1524 = vmatpush2.bf16.msra.mxu0 %v957
    %1525 = vmatprep.subr.bf16.mxu0 %v950
    %1526 = vmatpush2.bf16.msra.mxu0 %v949
    %1527 = vmatprep.subr.bf16.mxu0 %v942
    %1528 = vmatpush2.bf16.msra.mxu0 %v941
    %1529 = vmatprep.subr.bf16.mxu0 %v934
    %1530 = vmatpush2.bf16.msra.mxu0 %v933
    %1531 = vmatprep.subr.bf16.mxu0 %v926
    %1532 = vmatpush2.bf16.msra.mxu0 %v925
    %1533 = vmatprep.subr.bf16.mxu0 %v918
    %1534 = vmatpush2.bf16.msra.mxu0 %v917
    %1535 = vmatprep.subr.bf16.mxu0 %v910
    %1536 = vmatpush2.bf16.msra.mxu0 %v909
    %1537 = vmatprep.subr.bf16.mxu0 %v902
    %1538 = vmatpush2.bf16.msra.mxu0 %v901
    %1539 = vmatprep.mubr.bf16.mxu0 %v1094
    %1540 = vmatmul.mubr.bf16.gmra.mxu0 %v1093
    %v1541 = vpop.f32.mrf.mxu0
    %v1542 = vadd.f32 %v1501, %v1541
    %v1543 = vpop.f32.mrf.mxu0
    %v1544 = vadd.f32 %v1503, %v1543
    %v1545 = vpop.f32.mrf.mxu0
    %v1546 = vpop.f32.mrf.mxu0
    %1547 = vdwg.mxu0
    %1548 = vmatprep.subr.bf16.mxu0 %v1022
    %1549 = vmatpush1.bf16.msra.mxu0 %v1021
    %1550 = vmatprep.subr.bf16.mxu0 %v1014
    %1551 = vmatpush1.bf16.msra.mxu0 %v1013
    %1552 = vmatprep.subr.bf16.mxu0 %v1006
    %1553 = vmatpush1.bf16.msra.mxu0 %v1005
    %1554 = vmatprep.subr.bf16.mxu0 %v998
    %1555 = vmatpush1.bf16.msra.mxu0 %v997
    %1556 = vmatprep.subr.bf16.mxu0 %v990
    %1557 = vmatpush1.bf16.msra.mxu0 %v989
    %1558 = vmatprep.subr.bf16.mxu0 %v982
    %1559 = vmatpush1.bf16.msra.mxu0 %v981
    %1560 = vmatprep.subr.bf16.mxu0 %v974
    %1561 = vmatpush1.bf16.msra.mxu0 %v973
    %1562 = vmatprep.subr.bf16.mxu0 %v966
    %1563 = vmatpush1.bf16.msra.mxu0 %v965
    %1564 = vmatprep.subr.bf16.mxu0 %v1086
    %1565 = vmatpush2.bf16.msra.mxu0 %v1085
    %1566 = vmatprep.subr.bf16.mxu0 %v1078
    %1567 = vmatpush2.bf16.msra.mxu0 %v1077
    %1568 = vmatprep.subr.bf16.mxu0 %v1070
    %1569 = vmatpush2.bf16.msra.mxu0 %v1069
    %1570 = vmatprep.subr.bf16.mxu0 %v1062
    %1571 = vmatpush2.bf16.msra.mxu0 %v1061
    %1572 = vmatprep.subr.bf16.mxu0 %v1054
    %1573 = vmatpush2.bf16.msra.mxu0 %v1053
    %1574 = vmatprep.subr.bf16.mxu0 %v1046
    %1575 = vmatpush2.bf16.msra.mxu0 %v1045
    %1576 = vmatprep.subr.bf16.mxu0 %v1038
    %1577 = vmatpush2.bf16.msra.mxu0 %v1037
    %1578 = vmatprep.subr.bf16.mxu0 %v1030
    %1579 = vmatpush2.bf16.msra.mxu0 %v1029
    %1580 = vmatprep.mubr.bf16.mxu0 %v1096
    %1581 = vmatmul.mubr.bf16.gmra.mxu0 %v1095
    %v1582 = vpop.f32.mrf.mxu0
    %v1583 = vadd.f32 %v1542, %v1582
    %v1584 = vpop.f32.mrf.mxu0
    %v1585 = vadd.f32 %v1544, %v1584
    %v1586 = vpop.f32.mrf.mxu0
    %v1587 = vpop.f32.mrf.mxu0
    %1588 = vdwg.mxu0
    %1589 = vmatprep.subr.bf16.mxu0 %v640
    %1590 = vmatpush1.bf16.msra.mxu0 %v639
    %1591 = vmatprep.subr.bf16.mxu0 %v632
    %1592 = vmatpush1.bf16.msra.mxu0 %v631
    %1593 = vmatprep.subr.bf16.mxu0 %v624
    %1594 = vmatpush1.bf16.msra.mxu0 %v623
    %1595 = vmatprep.subr.bf16.mxu0 %v616
    %1596 = vmatpush1.bf16.msra.mxu0 %v615
    %1597 = vmatprep.subr.bf16.mxu0 %v608
    %1598 = vmatpush1.bf16.msra.mxu0 %v607
    %1599 = vmatprep.subr.bf16.mxu0 %v600
    %1600 = vmatpush1.bf16.msra.mxu0 %v599
    %1601 = vmatprep.subr.bf16.mxu0 %v592
    %1602 = vmatpush1.bf16.msra.mxu0 %v591
    %1603 = vmatprep.subr.bf16.mxu0 %v584
    %1604 = vmatpush1.bf16.msra.mxu0 %v583
    %1605 = vmatprep.subr.bf16.mxu0 %v704
    %1606 = vmatpush2.bf16.msra.mxu0 %v703
    %1607 = vmatprep.subr.bf16.mxu0 %v696
    %1608 = vmatpush2.bf16.msra.mxu0 %v695
    %1609 = vmatprep.subr.bf16.mxu0 %v688
    %1610 = vmatpush2.bf16.msra.mxu0 %v687
    %1611 = vmatprep.subr.bf16.mxu0 %v680
    %1612 = vmatpush2.bf16.msra.mxu0 %v679
    %1613 = vmatprep.subr.bf16.mxu0 %v672
    %1614 = vmatpush2.bf16.msra.mxu0 %v671
    %1615 = vmatprep.subr.bf16.mxu0 %v664
    %1616 = vmatpush2.bf16.msra.mxu0 %v663
    %1617 = vmatprep.subr.bf16.mxu0 %v656
    %1618 = vmatpush2.bf16.msra.mxu0 %v655
    %1619 = vmatprep.subr.bf16.mxu0 %v648
    %1620 = vmatpush2.bf16.msra.mxu0 %v647
    %1621 = vmatprep.mubr.bf16.mxu0 %v1090
    %1622 = vmatmul.mubr.bf16.gmra.mxu0 %v1089
    %v1623 = vpop.f32.mrf.mxu0
    %v1624 = vadd.f32 0.0, %v1623
    %v1625 = vpop.f32.mrf.mxu0
    %v1626 = vadd.f32 0.0, %v1625
    %v1627 = vpop.f32.mrf.mxu0
    %v1628 = vpop.f32.mrf.mxu0
    %1629 = vdwg.mxu0
    %1630 = vmatprep.subr.bf16.mxu0 %v768
    %1631 = vmatpush1.bf16.msra.mxu0 %v767
    %1632 = vmatprep.subr.bf16.mxu0 %v760
    %1633 = vmatpush1.bf16.msra.mxu0 %v759
    %1634 = vmatprep.subr.bf16.mxu0 %v752
    %1635 = vmatpush1.bf16.msra.mxu0 %v751
    %1636 = vmatprep.subr.bf16.mxu0 %v744
    %1637 = vmatpush1.bf16.msra.mxu0 %v743
    %1638 = vmatprep.subr.bf16.mxu0 %v736
    %1639 = vmatpush1.bf16.msra.mxu0 %v735
    %1640 = vmatprep.subr.bf16.mxu0 %v728
    %1641 = vmatpush1.bf16.msra.mxu0 %v727
    %1642 = vmatprep.subr.bf16.mxu0 %v720
    %1643 = vmatpush1.bf16.msra.mxu0 %v719
    %1644 = vmatprep.subr.bf16.mxu0 %v712
    %1645 = vmatpush1.bf16.msra.mxu0 %v711
    %1646 = vmatprep.subr.bf16.mxu0 %v832
    %1647 = vmatpush2.bf16.msra.mxu0 %v831
    %1648 = vmatprep.subr.bf16.mxu0 %v824
    %1649 = vmatpush2.bf16.msra.mxu0 %v823
    %1650 = vmatprep.subr.bf16.mxu0 %v816
    %1651 = vmatpush2.bf16.msra.mxu0 %v815
    %1652 = vmatprep.subr.bf16.mxu0 %v808
    %1653 = vmatpush2.bf16.msra.mxu0 %v807
    %1654 = vmatprep.subr.bf16.mxu0 %v800
    %1655 = vmatpush2.bf16.msra.mxu0 %v799
    %1656 = vmatprep.subr.bf16.mxu0 %v792
    %1657 = vmatpush2.bf16.msra.mxu0 %v791
    %1658 = vmatprep.subr.bf16.mxu0 %v784
    %1659 = vmatpush2.bf16.msra.mxu0 %v783
    %1660 = vmatprep.subr.bf16.mxu0 %v776
    %1661 = vmatpush2.bf16.msra.mxu0 %v775
    %1662 = vmatprep.mubr.bf16.mxu0 %v1092
    %1663 = vmatmul.mubr.bf16.gmra.mxu0 %v1091
    %v1664 = vpop.f32.mrf.mxu0
    %v1665 = vadd.f32 %v1624, %v1664
    %v1666 = vpop.f32.mrf.mxu0
    %v1667 = vadd.f32 %v1626, %v1666
    %v1668 = vpop.f32.mrf.mxu0
    %v1669 = vpop.f32.mrf.mxu0
    %1670 = vdwg.mxu0
    %1671 = vmatprep.subr.bf16.mxu0 %v896
    %1672 = vmatpush1.bf16.msra.mxu0 %v895
    %1673 = vmatprep.subr.bf16.mxu0 %v888
    %1674 = vmatpush1.bf16.msra.mxu0 %v887
    %1675 = vmatprep.subr.bf16.mxu0 %v880
    %1676 = vmatpush1.bf16.msra.mxu0 %v879
    %1677 = vmatprep.subr.bf16.mxu0 %v872
    %1678 = vmatpush1.bf16.msra.mxu0 %v871
    %1679 = vmatprep.subr.bf16.mxu0 %v864
    %1680 = vmatpush1.bf16.msra.mxu0 %v863
    %1681 = vmatprep.subr.bf16.mxu0 %v856
    %1682 = vmatpush1.bf16.msra.mxu0 %v855
    %1683 = vmatprep.subr.bf16.mxu0 %v848
    %1684 = vmatpush1.bf16.msra.mxu0 %v847
    %1685 = vmatprep.subr.bf16.mxu0 %v840
    %1686 = vmatpush1.bf16.msra.mxu0 %v839
    %1687 = vmatprep.subr.bf16.mxu0 %v960
    %1688 = vmatpush2.bf16.msra.mxu0 %v959
    %1689 = vmatprep.subr.bf16.mxu0 %v952
    %1690 = vmatpush2.bf16.msra.mxu0 %v951
    %1691 = vmatprep.subr.bf16.mxu0 %v944
    %1692 = vmatpush2.bf16.msra.mxu0 %v943
    %1693 = vmatprep.subr.bf16.mxu0 %v936
    %1694 = vmatpush2.bf16.msra.mxu0 %v935
    %1695 = vmatprep.subr.bf16.mxu0 %v928
    %1696 = vmatpush2.bf16.msra.mxu0 %v927
    %1697 = vmatprep.subr.bf16.mxu0 %v920
    %1698 = vmatpush2.bf16.msra.mxu0 %v919
    %1699 = vmatprep.subr.bf16.mxu0 %v912
    %1700 = vmatpush2.bf16.msra.mxu0 %v911
    %1701 = vmatprep.subr.bf16.mxu0 %v904
    %1702 = vmatpush2.bf16.msra.mxu0 %v903
    %1703 = vmatprep.mubr.bf16.mxu0 %v1094
    %1704 = vmatmul.mubr.bf16.gmra.mxu0 %v1093
    %v1705 = vpop.f32.mrf.mxu0
    %v1706 = vadd.f32 %v1665, %v1705
    %v1707 = vpop.f32.mrf.mxu0
    %v1708 = vadd.f32 %v1667, %v1707
    %v1709 = vpop.f32.mrf.mxu0
    %v1710 = vpop.f32.mrf.mxu0
    %1711 = vdwg.mxu0
    %1712 = vmatprep.subr.bf16.mxu0 %v1024
    %1713 = vmatpush1.bf16.msra.mxu0 %v1023
    %1714 = vmatprep.subr.bf16.mxu0 %v1016
    %1715 = vmatpush1.bf16.msra.mxu0 %v1015
    %1716 = vmatprep.subr.bf16.mxu0 %v1008
    %1717 = vmatpush1.bf16.msra.mxu0 %v1007
    %1718 = vmatprep.subr.bf16.mxu0 %v1000
    %1719 = vmatpush1.bf16.msra.mxu0 %v999
    %1720 = vmatprep.subr.bf16.mxu0 %v992
    %1721 = vmatpush1.bf16.msra.mxu0 %v991
    %1722 = vmatprep.subr.bf16.mxu0 %v984
    %1723 = vmatpush1.bf16.msra.mxu0 %v983
    %1724 = vmatprep.subr.bf16.mxu0 %v976
    %1725 = vmatpush1.bf16.msra.mxu0 %v975
    %1726 = vmatprep.subr.bf16.mxu0 %v968
    %1727 = vmatpush1.bf16.msra.mxu0 %v967
    %1728 = vmatprep.subr.bf16.mxu0 %v1088
    %1729 = vmatpush2.bf16.msra.mxu0 %v1087
    %1730 = vmatprep.subr.bf16.mxu0 %v1080
    %1731 = vmatpush2.bf16.msra.mxu0 %v1079
    %1732 = vmatprep.subr.bf16.mxu0 %v1072
    %1733 = vmatpush2.bf16.msra.mxu0 %v1071
    %1734 = vmatprep.subr.bf16.mxu0 %v1064
    %1735 = vmatpush2.bf16.msra.mxu0 %v1063
    %1736 = vmatprep.subr.bf16.mxu0 %v1056
    %1737 = vmatpush2.bf16.msra.mxu0 %v1055
    %1738 = vmatprep.subr.bf16.mxu0 %v1048
    %1739 = vmatpush2.bf16.msra.mxu0 %v1047
    %1740 = vmatprep.subr.bf16.mxu0 %v1040
    %1741 = vmatpush2.bf16.msra.mxu0 %v1039
    %1742 = vmatprep.subr.bf16.mxu0 %v1032
    %1743 = vmatpush2.bf16.msra.mxu0 %v1031
    %1744 = vmatprep.mubr.bf16.mxu0 %v1096
    %1745 = vmatmul.mubr.bf16.gmra.mxu0 %v1095
    %v1746 = vpop.f32.mrf.mxu0
    %v1747 = vadd.f32 %v1706, %v1746
    %v1748 = vpop.f32.mrf.mxu0
    %v1749 = vadd.f32 %v1708, %v1748
    %v1750 = vpop.f32.mrf.mxu0
    %v1751 = vpop.f32.mrf.mxu0
    %1752 = vdwg.mxu0
    %v1753 = vld [vmem:[%s4] sm:$0xff]
    %v1755 = vlaneseq
    %v1756 = vshrl.u32 %v1755, 7
    %v1757 = vsub.s32 0, %v1756
    %v1758 = vrot.slane %v1753, %v1757
    %v1759 = vlaneseq
    %v1760 = vshrl.u32 %v1759, 7
    %v1761 = vsub.s32 1, %v1760
    %v1762 = vrot.slane %v1753, %v1761
    %v1763 = vlaneseq
    %v1764 = vshrl.u32 %v1763, 7
    %v1765 = vsub.s32 2, %v1764
    %v1766 = vrot.slane %v1753, %v1765
    %v1767 = vlaneseq
    %v1768 = vshrl.u32 %v1767, 7
    %v1769 = vsub.s32 3, %v1768
    %v1770 = vrot.slane %v1753, %v1769
    %v1771 = vlaneseq
    %v1772 = vshrl.u32 %v1771, 7
    %v1773 = vsub.s32 4, %v1772
    %v1774 = vrot.slane %v1753, %v1773
    %v1775 = vlaneseq
    %v1776 = vshrl.u32 %v1775, 7
    %v1777 = vsub.s32 5, %v1776
    %v1778 = vrot.slane %v1753, %v1777
    %v1779 = vlaneseq
    %v1780 = vshrl.u32 %v1779, 7
    %v1781 = vsub.s32 6, %v1780
    %v1782 = vrot.slane %v1753, %v1781
    %v1783 = vlaneseq
    %v1784 = vshrl.u32 %v1783, 7
    %v1785 = vsub.s32 7, %v1784
    %v1786 = vrot.slane %v1753, %v1785
    %v1795 = vmul.f32 %v1255, %v1758
    %v1796 = vmul.f32 %v1257, %v1762
    %v1797 = vmul.f32 %v1419, %v1766
    %v1798 = vmul.f32 %v1421, %v1770
    %v1799 = vmul.f32 %v1583, %v1774
    %v1800 = vmul.f32 %v1585, %v1778
    %v1801 = vmul.f32 %v1747, %v1782
    %v1802 = vmul.f32 %v1749, %v1786
    %v1803 = vld [vmem:[#allocation7] sm:$0xff]
    %v1805 = vlaneseq
    %v1806 = vshrl.u32 %v1805, 7
    %v1807 = vsub.s32 0, %v1806
    %v1808 = vrot.slane %v1803, %v1807
    %v1809 = vlaneseq
    %v1810 = vshrl.u32 %v1809, 7
    %v1811 = vsub.s32 1, %v1810
    %v1812 = vrot.slane %v1803, %v1811
    %v1813 = vlaneseq
    %v1814 = vshrl.u32 %v1813, 7
    %v1815 = vsub.s32 2, %v1814
    %v1816 = vrot.slane %v1803, %v1815
    %v1817 = vlaneseq
    %v1818 = vshrl.u32 %v1817, 7
    %v1819 = vsub.s32 3, %v1818
    %v1820 = vrot.slane %v1803, %v1819
    %v1821 = vlaneseq
    %v1822 = vshrl.u32 %v1821, 7
    %v1823 = vsub.s32 4, %v1822
    %v1824 = vrot.slane %v1803, %v1823
    %v1825 = vlaneseq
    %v1826 = vshrl.u32 %v1825, 7
    %v1827 = vsub.s32 5, %v1826
    %v1828 = vrot.slane %v1803, %v1827
    %v1829 = vlaneseq
    %v1830 = vshrl.u32 %v1829, 7
    %v1831 = vsub.s32 6, %v1830
    %v1832 = vrot.slane %v1803, %v1831
    %v1833 = vlaneseq
    %v1834 = vshrl.u32 %v1833, 7
    %v1835 = vsub.s32 7, %v1834
    %v1836 = vrot.slane %v1803, %v1835
    %v1845 = vadd.f32 %v1795, %v1808
    %v1846 = vadd.f32 %v1796, %v1812
    %v1847 = vadd.f32 %v1797, %v1816
    %v1848 = vadd.f32 %v1798, %v1820
    %v1849 = vadd.f32 %v1799, %v1824
    %v1850 = vadd.f32 %v1800, %v1828
    %v1851 = vadd.f32 %v1801, %v1832
    %v1852 = vadd.f32 %v1802, %v1836
    %v1853 = vmax.f32 %v1845, 0.0
    %v1854 = vmax.f32 %v1846, 0.0
    %v1855 = vmax.f32 %v1847, 0.0
    %v1856 = vmax.f32 %v1848, 0.0
    %v1857 = vmax.f32 %v1849, 0.0
    %v1858 = vmax.f32 %v1850, 0.0
    %v1859 = vmax.f32 %v1851, 0.0
    %v1860 = vmax.f32 %v1852, 0.0
    %v1861 = vld [vmem:[#allocation8] sm:$0xff]
    %v1862 = vunpack.c.l.bf16 %v1861
    %v1863 = vunpack.c.h.bf16 %v1861
    %v1866 = vlaneseq
    %v1867 = vshrl.u32 %v1866, 7
    %v1868 = vsub.s32 0, %v1867
    %v1869 = vrot.slane %v1862, %v1868
    %v1870 = vlaneseq
    %v1871 = vshrl.u32 %v1870, 7
    %v1872 = vsub.s32 2, %v1871
    %v1873 = vrot.slane %v1862, %v1872
    %v1874 = vlaneseq
    %v1875 = vshrl.u32 %v1874, 7
    %v1876 = vsub.s32 4, %v1875
    %v1877 = vrot.slane %v1862, %v1876
    %v1878 = vlaneseq
    %v1879 = vshrl.u32 %v1878, 7
    %v1880 = vsub.s32 6, %v1879
    %v1881 = vrot.slane %v1862, %v1880
    %v1882 = vlaneseq
    %v1883 = vshrl.u32 %v1882, 7
    %v1884 = vsub.s32 0, %v1883
    %v1885 = vrot.slane %v1863, %v1884
    %v1886 = vlaneseq
    %v1887 = vshrl.u32 %v1886, 7
    %v1888 = vsub.s32 2, %v1887
    %v1889 = vrot.slane %v1863, %v1888
    %v1890 = vlaneseq
    %v1891 = vshrl.u32 %v1890, 7
    %v1892 = vsub.s32 4, %v1891
    %v1893 = vrot.slane %v1863, %v1892
    %v1894 = vlaneseq
    %v1895 = vshrl.u32 %v1894, 7
    %v1896 = vsub.s32 6, %v1895
    %v1897 = vrot.slane %v1863, %v1896
    %v1906 = vlaneseq
    %v1907 = vshrl.u32 %v1906, 7
    %v1908 = vsub.s32 0, %v1907
    %v1909 = vrot.slane %v1869, %v1908
    %v1910 = vlaneseq
    %v1911 = vshrl.u32 %v1910, 7
    %v1912 = vsub.s32 0, %v1911
    %v1913 = vrot.slane %v1873, %v1912
    %v1914 = vlaneseq
    %v1915 = vshrl.u32 %v1914, 7
    %v1916 = vsub.s32 0, %v1915
    %v1917 = vrot.slane %v1877, %v1916
    %v1918 = vlaneseq
    %v1919 = vshrl.u32 %v1918, 7
    %v1920 = vsub.s32 0, %v1919
    %v1921 = vrot.slane %v1881, %v1920
    %v1922 = vlaneseq
    %v1923 = vshrl.u32 %v1922, 7
    %v1924 = vsub.s32 0, %v1923
    %v1925 = vrot.slane %v1885, %v1924
    %v1926 = vlaneseq
    %v1927 = vshrl.u32 %v1926, 7
    %v1928 = vsub.s32 0, %v1927
    %v1929 = vrot.slane %v1889, %v1928
    %v1930 = vlaneseq
    %v1931 = vshrl.u32 %v1930, 7
    %v1932 = vsub.s32 0, %v1931
    %v1933 = vrot.slane %v1893, %v1932
    %v1934 = vlaneseq
    %v1935 = vshrl.u32 %v1934, 7
    %v1936 = vsub.s32 0, %v1935
    %v1937 = vrot.slane %v1897, %v1936
    %v1938 = vmul.f32 %v1853, %v1909
    %v1939 = vmul.f32 %v1854, %v1913
    %v1940 = vmul.f32 %v1855, %v1917
    %v1941 = vmul.f32 %v1856, %v1921
    %v1942 = vmul.f32 %v1857, %v1925
    %v1943 = vmul.f32 %v1858, %v1929
    %v1944 = vmul.f32 %v1859, %v1933
    %v1945 = vmul.f32 %v1860, %v1937
    %v1946 = vadd.f32 %v1938, %v1939
    %v1947 = vadd.f32 %v1946, %v1940
    %v1948 = vadd.f32 %v1947, %v1941
    %v1949 = vadd.f32 %v1948, %v1942
    %v1950 = vadd.f32 %v1949, %v1943
    %v1951 = vadd.f32 %v1950, %v1944
    %v1952 = vadd.f32 %v1951, %v1945
    %1953 = vadd.xlane.f32.xlu0 %v1952
    %v1954 = vpop.xlane.xlu0 %1953
    %v1955 = vld [vmem:[#allocation2] sm:$0x1]
    %v1957 = vlaneseq
    %v1958 = vshrl.u32 %v1957, 7
    %v1959 = vsub.s32 0, %v1958
    %v1960 = vrot.slane %v1955, %v1959
    %v1962 = vadd.f32 %v1954, %v1960
    %v1963 = vxor.u32 %v1962, 2147483648
    %v1964 = vmul.f32 %v1963, 1.442695
    %v1965 = vpow.pop %v1964
    %v1966 = vadd.f32 %v1965, 1.0
    %v1967 = vrcp.pop %v1966
    %v1968 = vmul.f32 1.0, %v1967
    %vm1969 = vcmask 7168
    %1970 = vst.msk [vmem:[%s8] sm:$0xff] %vm1969, %v1968
    // Predicated region
    $region50: #{tpu_custom_call.1} parent=1 // pred_check
      _
    $region51: #{tpu_custom_call.1} parent=1 // pred_check_branch
      %1972 = sbr.rel (0) target = $region53
    $region52: #{tpu_custom_call.1} parent=1 // pred_region
      _
    $region53: #{tpu_custom_call.1} parent=1 // pred_fallthru
      _
    // Predicated region
    $region54: #{tpu_custom_call.1} parent=1 // pred_check
      _
    $region55: #{tpu_custom_call.1} parent=1 // pred_check_branch
      %1974 = sbr.rel (0) target = $region57
    $region56: #{tpu_custom_call.1} parent=1 // pred_region
      _
    $region57: #{tpu_custom_call.1} parent=1 // pred_fallthru
      _
    %1975 = vsyncpa [#allocation4], 1
    %1976 = vsyncpa [#allocation6], 1
    %1977 = vsyncpa [#allocation9], 1

</llo_original>
